<compile_context>
chip_gen: v5e
topology: v5e:2x2
jax: 0.10.0
libtpu: 0.0.40
codegen_flags: <defaults>
</compile_context>

<pallas_src>
import functools

import jax
import jax.numpy as jnp
from jax.experimental import pallas as pl
from jax.experimental.pallas import tpu as pltpu


# ----------------------------------------------------------------------------
# Kernel
# ----------------------------------------------------------------------------
def attention_kernel(x_ref, wqkv_ref, bqkv_ref, wproj_ref, bproj_ref,
                     out_ref, o_scratch, *, num_heads, batch_block, seq_len):
    """One grid step: `batch_block` batch elements flattened to (rows, C)."""
    N = seq_len
    xf = x_ref[...]                                    # (rows, C) bf16
    rows, C = xf.shape
    hd = C // num_heads

    # Fused qkv projection on the full row slab: bf16 MXU operands, f32 acc.
    # `scale` is already folded into the q columns of wqkv / bqkv.
    qkv_f32 = jnp.dot(xf, wqkv_ref[...],
                      preferred_element_type=jnp.float32) + bqkv_ref[...]
    qkv = qkv_f32.astype(jnp.bfloat16)                 # one lane-dense convert

    # Contract last dims of q and k (q @ k^T) without an explicit transpose.
    dn_qkt = (((1,), (1,)), ((), ()))

    # TODO(synk): for batch_block * num_heads >> 8 (e.g. ViT-B/L), convert this
    # static unroll into lax.fori_loop over heads to bound live ranges.
    for b in range(batch_block):
        r0 = b * N
        for h in range(num_heads):
            lo = h * hd
            q_h = qkv[r0:r0 + N, lo:lo + hd]                       # (N, hd)
            k_h = qkv[r0:r0 + N, C + lo:C + lo + hd]               # (N, hd)
            v_h = qkv[r0:r0 + N, 2 * C + lo:2 * C + lo + hd]       # (N, hd)

            s = jax.lax.dot_general(q_h, k_h, dn_qkt,
                                    preferred_element_type=jnp.float32)  # (N, N)
            m = jnp.max(s, axis=-1, keepdims=True)
            p = jnp.exp(s - m)                                     # unnormalized
            l = jnp.sum(p, axis=-1, keepdims=True)                 # (N, 1)

            o_h = jnp.dot(p.astype(jnp.bfloat16), v_h,
                          preferred_element_type=jnp.float32)      # (N, hd)
            # Exact reciprocal on the tiny (N, 1) denominator, applied to the
            # (N, hd) head output rather than the full (N, N) matrix.
            o_h = o_h * pl.reciprocal(l)

            # Write into the preallocated head-output scratch at a static
            # column offset (no lane-dim concatenate of sub-128-lane pieces).
            o_scratch[r0:r0 + N, lo:lo + hd] = o_h

    o = o_scratch[...].astype(jnp.bfloat16)                        # (rows, C)
    out = jnp.dot(o, wproj_ref[...],
                  preferred_element_type=jnp.float32) + bproj_ref[...]
    out_ref[...] = out.astype(out_ref.dtype)


# ----------------------------------------------------------------------------
# pallas_call construction
# ----------------------------------------------------------------------------
def _weight_spec(shape, single_buffer):
    idx = lambda i: (0,) * len(shape)
    if single_buffer:
        # Constant block index -> a second pipeline buffer is pure VMEM waste.
        return pl.BlockSpec(shape, idx, pipeline_mode=pl.Buffered(1))
    return pl.BlockSpec(shape, idx)


def _vmem_limit_bytes(rows_block, N, C, num_heads):
    """Real footprint estimate (+2x headroom), clamped under v7x's 64 MiB."""
    hd = C // num_heads
    weights = (C * 3 * C + C * C) * 2 + (3 * C + C) * 4      # bf16 W, f32 bias
    x_blocks = rows_block * C * 2 * 2                        # bf16, double-buf
    out_blocks = rows_block * C * 4 * 2                      # f32, double-buf
    qkv_act = rows_block * 3 * C * (4 + 2)                   # f32 + bf16 copy
    head_scratch = rows_block * C * 4                        # f32 scratch
    per_head_live = 4 * N * N * 4 + 4 * N * hd * 4           # scores / slices
    est = weights + x_blocks + out_blocks + qkv_act + head_scratch + per_head_live
    return int(min(48 * 1024 * 1024, max(16 * 1024 * 1024, 2 * est)))


def _build_call(rows_total, rows_block, C, out_dtype, kernel, *,
                single_buffer_weights, vmem_limit_bytes):
    num_blocks = rows_total // rows_block
    return pl.pallas_call(
        kernel,
        out_shape=jax.ShapeDtypeStruct((rows_total, C), out_dtype),
        grid_spec=pltpu.PrefetchScalarGridSpec(
            num_scalar_prefetch=0,
            grid=(num_blocks,),
            in_specs=[
                pl.BlockSpec((rows_block, C), lambda i: (i, 0)),      # x (bf16)
                _weight_spec((C, 3 * C), single_buffer_weights),      # wqkv bf16
                _weight_spec((1, 3 * C), single_buffer_weights),      # bqkv f32
                _weight_spec((C, C), single_buffer_weights),          # wproj bf16
                _weight_spec((1, C), single_buffer_weights),          # bproj f32
            ],
            out_specs=pl.BlockSpec((rows_block, C), lambda i: (i, 0)),
            scratch_shapes=[pltpu.VMEM((rows_block, C), jnp.float32)],
        ),
        compiler_params=pltpu.CompilerParams(
            dimension_semantics=("parallel",),          # shard blocks across TCs
            vmem_limit_bytes=vmem_limit_bytes),
    )


def _pick_batch_block(B, N, target_rows):
    """Smallest divisor of B giving >= target_rows rows per step (and an
    8-divisible sublane count); otherwise fold the whole batch into one step."""
    for d in range(1, B):
        if B % d == 0 and d * N >= target_rows and (d * N) % 8 == 0:
            return d
    return B


# ----------------------------------------------------------------------------
# Wrapper
# ----------------------------------------------------------------------------
def prepare_params(params, *, num_heads, qk_scale=None):
    """One-time param prep: fold `scale` into the q columns, cast to kernel dtypes."""
    C = params['wproj'].shape[0]
    hd = C // num_heads
    scale = qk_scale if qk_scale is not None else hd ** (-0.5)
    col_scale = jnp.concatenate([jnp.full((C,), scale, jnp.float32),
                                 jnp.ones((2 * C,), jnp.float32)])
    return {
        'wqkv': (params['wqkv'] * col_scale[None, :]).astype(jnp.bfloat16),
        'bqkv': (params['bqkv'] * col_scale[None, :]).astype(jnp.float32),
        'wproj': params['wproj'].astype(jnp.bfloat16),
        'bproj': params['bproj'].astype(jnp.float32),
    }


def attention_forward(x, prepared_params, *, num_heads, block_rows_target=512):
    B, N, C = x.shape
    assert C % num_heads == 0
    bB = _pick_batch_block(B, N, block_rows_target)
    rows_block = bB * N

    kernel = functools.partial(attention_kernel, num_heads=num_heads,
                               batch_block=bB, seq_len=N)
    vmem_limit = _vmem_limit_bytes(rows_block, N, C, num_heads)

    # Flatten batch*seq rows in the wrapper (no in-kernel reshape) and feed bf16.
    # TODO(synk): for C < 128 a fully lane-dense (bB, N*C) output layout would
    # avoid masked stores; irrelevant at real ViT dims (C >= 128).
    x_flat = x.reshape(B * N, C).astype(jnp.bfloat16)
    args = (x_flat, prepared_params['wqkv'], prepared_params['bqkv'],
            prepared_params['wproj'], prepared_params['bproj'])

    single = hasattr(pl, "Buffered")
    try:
        out = _build_call(B * N, rows_block, C, x.dtype, kernel,
                          single_buffer_weights=single,
                          vmem_limit_bytes=vmem_limit)(*args)
    except Exception:
        if not single:
            raise
        # NOTE: eager-only fallback for builds rejecting pl.Buffered(1); under
        # jax.jit gate on capability/version instead of catching here.
        out = _build_call(B * N, rows_block, C, x.dtype, kernel,
                          single_buffer_weights=False,
                          vmem_limit_bytes=vmem_limit)(*args)
    return out.reshape(B, N, C)


# ----------------------------------------------------------------------------
# Pure-JAX reference (mirrors the PyTorch Attention.forward in eval mode)
# ----------------------------------------------------------------------------
def reference_attention(x, params, *, num_heads, qk_scale=None):
    B, N, C = x.shape
    hd = C // num_heads
    scale = qk_scale if qk_scale is not None else hd ** (-0.5)

    qkv = x @ params['wqkv'] + params['bqkv'][0]
    qkv = qkv.reshape(B, N, 3, num_heads, hd).transpose(2, 0, 3, 1, 4)
    q, k, v = qkv[0], qkv[1], qkv[2]
    attn = jax.nn.softmax((q @ jnp.swapaxes(k, -2, -1)) * scale, axis=-1)
    o = (attn @ v).transpose(0, 2, 1, 3).reshape(B, N, C)
    return o @ params['wproj'] + params['bproj'][0]


def init_params(key, dim, *, qkv_bias=True):
    k0, k1, k2, k3 = jax.random.split(key, 4)
    s = 0.02
    bqkv = (s * jax.random.normal(k2, (1, 3 * dim), jnp.float32)
            if qkv_bias else jnp.zeros((1, 3 * dim), jnp.float32))
    return {
        'wqkv': s * jax.random.normal(k0, (dim, 3 * dim), jnp.float32),
        'bqkv': bqkv,
        'wproj': s * jax.random.normal(k1, (dim, dim), jnp.float32),
        'bproj': s * jax.random.normal(k3, (1, dim), jnp.float32),
    }


if __name__ == "__main__":
    B, N, C = 2, 8, 32          # batch, tokens (num_patches + 1), embed dim
    num_heads = 4

    key = jax.random.PRNGKey(0)
    kx, kp = jax.random.split(key)
    x = jax.random.normal(kx, (B, N, C), jnp.float32)
    params = init_params(kp, C, qkv_bias=True)
    prepared = prepare_params(params, num_heads=num_heads, qk_scale=None)

    out = attention_forward(x, prepared, num_heads=num_heads)
    out = jax.block_until_ready(out)

    ref = reference_attention(x, params, num_heads=num_heads, qk_scale=None)
    assert out.shape == (B, N, C)
    max_err = float(jnp.max(jnp.abs(out - ref)))
    # bf16 weights/activations on the MXU -> bf16-level tolerance vs f32 ref.
    assert jnp.allclose(out, ref, rtol=2e-2, atol=2e-3), (
        f"mismatch vs reference, max abs err {max_err}")

    print("KERNEL_OK")
</pallas_src>

<mosaic_0001>
module attributes {stable_mosaic.version = 11 : i64} {
  func.func @attention_kernel(%arg0: i32, %arg1: memref<16x32xbf16, #tpu.memory_space<vmem>>, %arg2: memref<32x96xbf16, #tpu.memory_space<vmem>>, %arg3: memref<1x96xf32, #tpu.memory_space<vmem>>, %arg4: memref<32x32xbf16, #tpu.memory_space<vmem>>, %arg5: memref<1x32xf32, #tpu.memory_space<vmem>>, %arg6: memref<16x32xf32, #tpu.memory_space<vmem>>, %arg7: memref<16x32xf32, #tpu.memory_space<vmem>>) attributes {dimension_semantics = [#tpu.dimension_semantics<parallel>], iteration_bounds = array<i64: 1>, scalar_prefetch = 0 : i64, scratch_operands = 1 : i64, tpu.core_type = #tpu.core_type<tc>, window_params = [{transform_indices = @transform_0, window_bounds = array<i64: 16, 32>}, {pipeline_mode = #tpu.pipeline_mode<synchronous>, transform_indices = @transform_1, window_bounds = array<i64: 32, 96>}, {pipeline_mode = #tpu.pipeline_mode<synchronous>, transform_indices = @transform_2, window_bounds = array<i64: 1, 96>}, {pipeline_mode = #tpu.pipeline_mode<synchronous>, transform_indices = @transform_3, window_bounds = array<i64: 32, 32>}, {pipeline_mode = #tpu.pipeline_mode<synchronous>, transform_indices = @transform_4, window_bounds = array<i64: 1, 32>}, {transform_indices = @transform_5, window_bounds = array<i64: 16, 32>}]} {
    %c0 = arith.constant 0 : index
    %c0_0 = arith.constant 0 : index
    %0 = vector.load %arg1[%c0, %c0_0] : memref<16x32xbf16, #tpu.memory_space<vmem>>, vector<16x32xbf16>
    %c0_1 = arith.constant 0 : index
    %c0_2 = arith.constant 0 : index
    %1 = vector.load %arg2[%c0_1, %c0_2] : memref<32x96xbf16, #tpu.memory_space<vmem>>, vector<32x96xbf16>
    %cst = arith.constant dense<0.000000e+00> : vector<16x96xf32>
    %2 = tpu.matmul %0, %1, %cst {dimension_numbers = #tpu.dot_dimension_numbers<[1], [0], [0], [1], [0, 0, 1, 1], [], []>} : vector<16x32xbf16>, vector<32x96xbf16>, vector<16x96xf32> -> vector<16x96xf32>
    %c0_3 = arith.constant 0 : index
    %c0_4 = arith.constant 0 : index
    %3 = vector.load %arg3[%c0_3, %c0_4] : memref<1x96xf32, #tpu.memory_space<vmem>>, vector<1x96xf32>
    %4 = vector.broadcast %3 : vector<1x96xf32> to vector<16x96xf32>
    %5 = arith.addf %2, %4 : vector<16x96xf32>
    %6 = arith.truncf %5 : vector<16x96xf32> to vector<16x96xbf16>
    %7 = vector.extract_strided_slice %6 {offsets = [0, 0], sizes = [8, 8], strides = [1, 1]} : vector<16x96xbf16> to vector<8x8xbf16>
    %8 = vector.extract_strided_slice %6 {offsets = [0, 32], sizes = [8, 8], strides = [1, 1]} : vector<16x96xbf16> to vector<8x8xbf16>
    %9 = vector.extract_strided_slice %6 {offsets = [0, 64], sizes = [8, 8], strides = [1, 1]} : vector<16x96xbf16> to vector<8x8xbf16>
    %cst_5 = arith.constant dense<0.000000e+00> : vector<8x8xf32>
    %10 = tpu.matmul %7, %8, %cst_5 {dimension_numbers = #tpu.dot_dimension_numbers<[1], [1], [0], [0], [0, 0, 1, 0], [], []>} : vector<8x8xbf16>, vector<8x8xbf16>, vector<8x8xf32> -> vector<8x8xf32>
    %cst_6 = arith.constant dense<0xFF800000> : vector<8xf32>
    %11 = vector.multi_reduction <maximumf>, %10, %cst_6 [1] : vector<8x8xf32> to vector<8xf32>
    %12 = vector.shape_cast %11 : vector<8xf32> to vector<8x1xf32>
    %13 = vector.broadcast %12 : vector<8x1xf32> to vector<8x8xf32>
    %14 = arith.subf %10, %13 : vector<8x8xf32>
    %15 = math.exp %14 : vector<8x8xf32>
    %cst_7 = arith.constant dense<0.000000e+00> : vector<8xf32>
    %16 = vector.multi_reduction <add>, %15, %cst_7 [1] : vector<8x8xf32> to vector<8xf32>
    %17 = vector.shape_cast %16 : vector<8xf32> to vector<8x1xf32>
    %18 = arith.truncf %15 : vector<8x8xf32> to vector<8x8xbf16>
    %cst_8 = arith.constant dense<0.000000e+00> : vector<8x8xf32>
    %19 = tpu.matmul %18, %9, %cst_8 {dimension_numbers = #tpu.dot_dimension_numbers<[1], [0], [0], [1], [0, 0, 1, 1], [], []>} : vector<8x8xbf16>, vector<8x8xbf16>, vector<8x8xf32> -> vector<8x8xf32>
    %20 = tpu.reciprocal %17 : vector<8x1xf32> -> vector<8x1xf32>
    %21 = vector.broadcast %20 : vector<8x1xf32> to vector<8x8xf32>
    %22 = arith.mulf %19, %21 : vector<8x8xf32>
    %c0_9 = arith.constant 0 : index
    %c0_10 = arith.constant 0 : index
    %23 = vector.load %arg7[%c0_9, %c0_10] : memref<16x32xf32, #tpu.memory_space<vmem>>, vector<8x8xf32>
    tpu.vector_store %arg7[%c0_9, %c0_10], %22 {strides = array<i32>} : memref<16x32xf32, #tpu.memory_space<vmem>>, vector<8x8xf32>,
    %24 = vector.extract_strided_slice %6 {offsets = [0, 8], sizes = [8, 8], strides = [1, 1]} : vector<16x96xbf16> to vector<8x8xbf16>
    %25 = vector.extract_strided_slice %6 {offsets = [0, 40], sizes = [8, 8], strides = [1, 1]} : vector<16x96xbf16> to vector<8x8xbf16>
    %26 = vector.extract_strided_slice %6 {offsets = [0, 72], sizes = [8, 8], strides = [1, 1]} : vector<16x96xbf16> to vector<8x8xbf16>
    %cst_11 = arith.constant dense<0.000000e+00> : vector<8x8xf32>
    %27 = tpu.matmul %24, %25, %cst_11 {dimension_numbers = #tpu.dot_dimension_numbers<[1], [1], [0], [0], [0, 0, 1, 0], [], []>} : vector<8x8xbf16>, vector<8x8xbf16>, vector<8x8xf32> -> vector<8x8xf32>
    %cst_12 = arith.constant dense<0xFF800000> : vector<8xf32>
    %28 = vector.multi_reduction <maximumf>, %27, %cst_12 [1] : vector<8x8xf32> to vector<8xf32>
    %29 = vector.shape_cast %28 : vector<8xf32> to vector<8x1xf32>
    %30 = vector.broadcast %29 : vector<8x1xf32> to vector<8x8xf32>
    %31 = arith.subf %27, %30 : vector<8x8xf32>
    %32 = math.exp %31 : vector<8x8xf32>
    %cst_13 = arith.constant dense<0.000000e+00> : vector<8xf32>
    %33 = vector.multi_reduction <add>, %32, %cst_13 [1] : vector<8x8xf32> to vector<8xf32>
    %34 = vector.shape_cast %33 : vector<8xf32> to vector<8x1xf32>
    %35 = arith.truncf %32 : vector<8x8xf32> to vector<8x8xbf16>
    %cst_14 = arith.constant dense<0.000000e+00> : vector<8x8xf32>
    %36 = tpu.matmul %35, %26, %cst_14 {dimension_numbers = #tpu.dot_dimension_numbers<[1], [0], [0], [1], [0, 0, 1, 1], [], []>} : vector<8x8xbf16>, vector<8x8xbf16>, vector<8x8xf32> -> vector<8x8xf32>
    %37 = tpu.reciprocal %34 : vector<8x1xf32> -> vector<8x1xf32>
    %38 = vector.broadcast %37 : vector<8x1xf32> to vector<8x8xf32>
    %39 = arith.mulf %36, %38 : vector<8x8xf32>
    %c0_15 = arith.constant 0 : index
    %c8 = arith.constant 8 : index
    %40 = vector.load %arg7[%c0_15, %c8] : memref<16x32xf32, #tpu.memory_space<vmem>>, vector<8x8xf32>
    tpu.vector_store %arg7[%c0_15, %c8], %39 {strides = array<i32>} : memref<16x32xf32, #tpu.memory_space<vmem>>, vector<8x8xf32>,
    %41 = vector.extract_strided_slice %6 {offsets = [0, 16], sizes = [8, 8], strides = [1, 1]} : vector<16x96xbf16> to vector<8x8xbf16>
    %42 = vector.extract_strided_slice %6 {offsets = [0, 48], sizes = [8, 8], strides = [1, 1]} : vector<16x96xbf16> to vector<8x8xbf16>
    %43 = vector.extract_strided_slice %6 {offsets = [0, 80], sizes = [8, 8], strides = [1, 1]} : vector<16x96xbf16> to vector<8x8xbf16>
    %cst_16 = arith.constant dense<0.000000e+00> : vector<8x8xf32>
    %44 = tpu.matmul %41, %42, %cst_16 {dimension_numbers = #tpu.dot_dimension_numbers<[1], [1], [0], [0], [0, 0, 1, 0], [], []>} : vector<8x8xbf16>, vector<8x8xbf16>, vector<8x8xf32> -> vector<8x8xf32>
    %cst_17 = arith.constant dense<0xFF800000> : vector<8xf32>
    %45 = vector.multi_reduction <maximumf>, %44, %cst_17 [1] : vector<8x8xf32> to vector<8xf32>
    %46 = vector.shape_cast %45 : vector<8xf32> to vector<8x1xf32>
    %47 = vector.broadcast %46 : vector<8x1xf32> to vector<8x8xf32>
    %48 = arith.subf %44, %47 : vector<8x8xf32>
    %49 = math.exp %48 : vector<8x8xf32>
    %cst_18 = arith.constant dense<0.000000e+00> : vector<8xf32>
    %50 = vector.multi_reduction <add>, %49, %cst_18 [1] : vector<8x8xf32> to vector<8xf32>
    %51 = vector.shape_cast %50 : vector<8xf32> to vector<8x1xf32>
    %52 = arith.truncf %49 : vector<8x8xf32> to vector<8x8xbf16>
    %cst_19 = arith.constant dense<0.000000e+00> : vector<8x8xf32>
    %53 = tpu.matmul %52, %43, %cst_19 {dimension_numbers = #tpu.dot_dimension_numbers<[1], [0], [0], [1], [0, 0, 1, 1], [], []>} : vector<8x8xbf16>, vector<8x8xbf16>, vector<8x8xf32> -> vector<8x8xf32>
    %54 = tpu.reciprocal %51 : vector<8x1xf32> -> vector<8x1xf32>
    %55 = vector.broadcast %54 : vector<8x1xf32> to vector<8x8xf32>
    %56 = arith.mulf %53, %55 : vector<8x8xf32>
    %c0_20 = arith.constant 0 : index
    %c16 = arith.constant 16 : index
    %57 = vector.load %arg7[%c0_20, %c16] : memref<16x32xf32, #tpu.memory_space<vmem>>, vector<8x8xf32>
    tpu.vector_store %arg7[%c0_20, %c16], %56 {strides = array<i32>} : memref<16x32xf32, #tpu.memory_space<vmem>>, vector<8x8xf32>,
    %58 = vector.extract_strided_slice %6 {offsets = [0, 24], sizes = [8, 8], strides = [1, 1]} : vector<16x96xbf16> to vector<8x8xbf16>
    %59 = vector.extract_strided_slice %6 {offsets = [0, 56], sizes = [8, 8], strides = [1, 1]} : vector<16x96xbf16> to vector<8x8xbf16>
    %60 = vector.extract_strided_slice %6 {offsets = [0, 88], sizes = [8, 8], strides = [1, 1]} : vector<16x96xbf16> to vector<8x8xbf16>
    %cst_21 = arith.constant dense<0.000000e+00> : vector<8x8xf32>
    %61 = tpu.matmul %58, %59, %cst_21 {dimension_numbers = #tpu.dot_dimension_numbers<[1], [1], [0], [0], [0, 0, 1, 0], [], []>} : vector<8x8xbf16>, vector<8x8xbf16>, vector<8x8xf32> -> vector<8x8xf32>
    %cst_22 = arith.constant dense<0xFF800000> : vector<8xf32>
    %62 = vector.multi_reduction <maximumf>, %61, %cst_22 [1] : vector<8x8xf32> to vector<8xf32>
    %63 = vector.shape_cast %62 : vector<8xf32> to vector<8x1xf32>
    %64 = vector.broadcast %63 : vector<8x1xf32> to vector<8x8xf32>
    %65 = arith.subf %61, %64 : vector<8x8xf32>
    %66 = math.exp %65 : vector<8x8xf32>
    %cst_23 = arith.constant dense<0.000000e+00> : vector<8xf32>
    %67 = vector.multi_reduction <add>, %66, %cst_23 [1] : vector<8x8xf32> to vector<8xf32>
    %68 = vector.shape_cast %67 : vector<8xf32> to vector<8x1xf32>
    %69 = arith.truncf %66 : vector<8x8xf32> to vector<8x8xbf16>
    %cst_24 = arith.constant dense<0.000000e+00> : vector<8x8xf32>
    %70 = tpu.matmul %69, %60, %cst_24 {dimension_numbers = #tpu.dot_dimension_numbers<[1], [0], [0], [1], [0, 0, 1, 1], [], []>} : vector<8x8xbf16>, vector<8x8xbf16>, vector<8x8xf32> -> vector<8x8xf32>
    %71 = tpu.reciprocal %68 : vector<8x1xf32> -> vector<8x1xf32>
    %72 = vector.broadcast %71 : vector<8x1xf32> to vector<8x8xf32>
    %73 = arith.mulf %70, %72 : vector<8x8xf32>
    %c0_25 = arith.constant 0 : index
    %c24 = arith.constant 24 : index
    %74 = vector.load %arg7[%c0_25, %c24] : memref<16x32xf32, #tpu.memory_space<vmem>>, vector<8x8xf32>
    tpu.vector_store %arg7[%c0_25, %c24], %73 {strides = array<i32>} : memref<16x32xf32, #tpu.memory_space<vmem>>, vector<8x8xf32>,
    %75 = vector.extract_strided_slice %6 {offsets = [8, 0], sizes = [8, 8], strides = [1, 1]} : vector<16x96xbf16> to vector<8x8xbf16>
    %76 = vector.extract_strided_slice %6 {offsets = [8, 32], sizes = [8, 8], strides = [1, 1]} : vector<16x96xbf16> to vector<8x8xbf16>
    %77 = vector.extract_strided_slice %6 {offsets = [8, 64], sizes = [8, 8], strides = [1, 1]} : vector<16x96xbf16> to vector<8x8xbf16>
    %cst_26 = arith.constant dense<0.000000e+00> : vector<8x8xf32>
    %78 = tpu.matmul %75, %76, %cst_26 {dimension_numbers = #tpu.dot_dimension_numbers<[1], [1], [0], [0], [0, 0, 1, 0], [], []>} : vector<8x8xbf16>, vector<8x8xbf16>, vector<8x8xf32> -> vector<8x8xf32>
    %cst_27 = arith.constant dense<0xFF800000> : vector<8xf32>
    %79 = vector.multi_reduction <maximumf>, %78, %cst_27 [1] : vector<8x8xf32> to vector<8xf32>
    %80 = vector.shape_cast %79 : vector<8xf32> to vector<8x1xf32>
    %81 = vector.broadcast %80 : vector<8x1xf32> to vector<8x8xf32>
    %82 = arith.subf %78, %81 : vector<8x8xf32>
    %83 = math.exp %82 : vector<8x8xf32>
    %cst_28 = arith.constant dense<0.000000e+00> : vector<8xf32>
    %84 = vector.multi_reduction <add>, %83, %cst_28 [1] : vector<8x8xf32> to vector<8xf32>
    %85 = vector.shape_cast %84 : vector<8xf32> to vector<8x1xf32>
    %86 = arith.truncf %83 : vector<8x8xf32> to vector<8x8xbf16>
    %cst_29 = arith.constant dense<0.000000e+00> : vector<8x8xf32>
    %87 = tpu.matmul %86, %77, %cst_29 {dimension_numbers = #tpu.dot_dimension_numbers<[1], [0], [0], [1], [0, 0, 1, 1], [], []>} : vector<8x8xbf16>, vector<8x8xbf16>, vector<8x8xf32> -> vector<8x8xf32>
    %88 = tpu.reciprocal %85 : vector<8x1xf32> -> vector<8x1xf32>
    %89 = vector.broadcast %88 : vector<8x1xf32> to vector<8x8xf32>
    %90 = arith.mulf %87, %89 : vector<8x8xf32>
    %c8_30 = arith.constant 8 : index
    %c0_31 = arith.constant 0 : index
    %91 = vector.load %arg7[%c8_30, %c0_31] : memref<16x32xf32, #tpu.memory_space<vmem>>, vector<8x8xf32>
    tpu.vector_store %arg7[%c8_30, %c0_31], %90 {strides = array<i32>} : memref<16x32xf32, #tpu.memory_space<vmem>>, vector<8x8xf32>,
    %92 = vector.extract_strided_slice %6 {offsets = [8, 8], sizes = [8, 8], strides = [1, 1]} : vector<16x96xbf16> to vector<8x8xbf16>
    %93 = vector.extract_strided_slice %6 {offsets = [8, 40], sizes = [8, 8], strides = [1, 1]} : vector<16x96xbf16> to vector<8x8xbf16>
    %94 = vector.extract_strided_slice %6 {offsets = [8, 72], sizes = [8, 8], strides = [1, 1]} : vector<16x96xbf16> to vector<8x8xbf16>
    %cst_32 = arith.constant dense<0.000000e+00> : vector<8x8xf32>
    %95 = tpu.matmul %92, %93, %cst_32 {dimension_numbers = #tpu.dot_dimension_numbers<[1], [1], [0], [0], [0, 0, 1, 0], [], []>} : vector<8x8xbf16>, vector<8x8xbf16>, vector<8x8xf32> -> vector<8x8xf32>
    %cst_33 = arith.constant dense<0xFF800000> : vector<8xf32>
    %96 = vector.multi_reduction <maximumf>, %95, %cst_33 [1] : vector<8x8xf32> to vector<8xf32>
    %97 = vector.shape_cast %96 : vector<8xf32> to vector<8x1xf32>
    %98 = vector.broadcast %97 : vector<8x1xf32> to vector<8x8xf32>
    %99 = arith.subf %95, %98 : vector<8x8xf32>
    %100 = math.exp %99 : vector<8x8xf32>
    %cst_34 = arith.constant dense<0.000000e+00> : vector<8xf32>
    %101 = vector.multi_reduction <add>, %100, %cst_34 [1] : vector<8x8xf32> to vector<8xf32>
    %102 = vector.shape_cast %101 : vector<8xf32> to vector<8x1xf32>
    %103 = arith.truncf %100 : vector<8x8xf32> to vector<8x8xbf16>
    %cst_35 = arith.constant dense<0.000000e+00> : vector<8x8xf32>
    %104 = tpu.matmul %103, %94, %cst_35 {dimension_numbers = #tpu.dot_dimension_numbers<[1], [0], [0], [1], [0, 0, 1, 1], [], []>} : vector<8x8xbf16>, vector<8x8xbf16>, vector<8x8xf32> -> vector<8x8xf32>
    %105 = tpu.reciprocal %102 : vector<8x1xf32> -> vector<8x1xf32>
    %106 = vector.broadcast %105 : vector<8x1xf32> to vector<8x8xf32>
    %107 = arith.mulf %104, %106 : vector<8x8xf32>
    %c8_36 = arith.constant 8 : index
    %c8_37 = arith.constant 8 : index
    %108 = vector.load %arg7[%c8_36, %c8_37] : memref<16x32xf32, #tpu.memory_space<vmem>>, vector<8x8xf32>
    tpu.vector_store %arg7[%c8_36, %c8_37], %107 {strides = array<i32>} : memref<16x32xf32, #tpu.memory_space<vmem>>, vector<8x8xf32>,
    %109 = vector.extract_strided_slice %6 {offsets = [8, 16], sizes = [8, 8], strides = [1, 1]} : vector<16x96xbf16> to vector<8x8xbf16>
    %110 = vector.extract_strided_slice %6 {offsets = [8, 48], sizes = [8, 8], strides = [1, 1]} : vector<16x96xbf16> to vector<8x8xbf16>
    %111 = vector.extract_strided_slice %6 {offsets = [8, 80], sizes = [8, 8], strides = [1, 1]} : vector<16x96xbf16> to vector<8x8xbf16>
    %cst_38 = arith.constant dense<0.000000e+00> : vector<8x8xf32>
    %112 = tpu.matmul %109, %110, %cst_38 {dimension_numbers = #tpu.dot_dimension_numbers<[1], [1], [0], [0], [0, 0, 1, 0], [], []>} : vector<8x8xbf16>, vector<8x8xbf16>, vector<8x8xf32> -> vector<8x8xf32>
    %cst_39 = arith.constant dense<0xFF800000> : vector<8xf32>
    %113 = vector.multi_reduction <maximumf>, %112, %cst_39 [1] : vector<8x8xf32> to vector<8xf32>
    %114 = vector.shape_cast %113 : vector<8xf32> to vector<8x1xf32>
    %115 = vector.broadcast %114 : vector<8x1xf32> to vector<8x8xf32>
    %116 = arith.subf %112, %115 : vector<8x8xf32>
    %117 = math.exp %116 : vector<8x8xf32>
    %cst_40 = arith.constant dense<0.000000e+00> : vector<8xf32>
    %118 = vector.multi_reduction <add>, %117, %cst_40 [1] : vector<8x8xf32> to vector<8xf32>
    %119 = vector.shape_cast %118 : vector<8xf32> to vector<8x1xf32>
    %120 = arith.truncf %117 : vector<8x8xf32> to vector<8x8xbf16>
    %cst_41 = arith.constant dense<0.000000e+00> : vector<8x8xf32>
    %121 = tpu.matmul %120, %111, %cst_41 {dimension_numbers = #tpu.dot_dimension_numbers<[1], [0], [0], [1], [0, 0, 1, 1], [], []>} : vector<8x8xbf16>, vector<8x8xbf16>, vector<8x8xf32> -> vector<8x8xf32>
    %122 = tpu.reciprocal %119 : vector<8x1xf32> -> vector<8x1xf32>
    %123 = vector.broadcast %122 : vector<8x1xf32> to vector<8x8xf32>
    %124 = arith.mulf %121, %123 : vector<8x8xf32>
    %c8_42 = arith.constant 8 : index
    %c16_43 = arith.constant 16 : index
    %125 = vector.load %arg7[%c8_42, %c16_43] : memref<16x32xf32, #tpu.memory_space<vmem>>, vector<8x8xf32>
    tpu.vector_store %arg7[%c8_42, %c16_43], %124 {strides = array<i32>} : memref<16x32xf32, #tpu.memory_space<vmem>>, vector<8x8xf32>,
    %126 = vector.extract_strided_slice %6 {offsets = [8, 24], sizes = [8, 8], strides = [1, 1]} : vector<16x96xbf16> to vector<8x8xbf16>
    %127 = vector.extract_strided_slice %6 {offsets = [8, 56], sizes = [8, 8], strides = [1, 1]} : vector<16x96xbf16> to vector<8x8xbf16>
    %128 = vector.extract_strided_slice %6 {offsets = [8, 88], sizes = [8, 8], strides = [1, 1]} : vector<16x96xbf16> to vector<8x8xbf16>
    %cst_44 = arith.constant dense<0.000000e+00> : vector<8x8xf32>
    %129 = tpu.matmul %126, %127, %cst_44 {dimension_numbers = #tpu.dot_dimension_numbers<[1], [1], [0], [0], [0, 0, 1, 0], [], []>} : vector<8x8xbf16>, vector<8x8xbf16>, vector<8x8xf32> -> vector<8x8xf32>
    %cst_45 = arith.constant dense<0xFF800000> : vector<8xf32>
    %130 = vector.multi_reduction <maximumf>, %129, %cst_45 [1] : vector<8x8xf32> to vector<8xf32>
    %131 = vector.shape_cast %130 : vector<8xf32> to vector<8x1xf32>
    %132 = vector.broadcast %131 : vector<8x1xf32> to vector<8x8xf32>
    %133 = arith.subf %129, %132 : vector<8x8xf32>
    %134 = math.exp %133 : vector<8x8xf32>
    %cst_46 = arith.constant dense<0.000000e+00> : vector<8xf32>
    %135 = vector.multi_reduction <add>, %134, %cst_46 [1] : vector<8x8xf32> to vector<8xf32>
    %136 = vector.shape_cast %135 : vector<8xf32> to vector<8x1xf32>
    %137 = arith.truncf %134 : vector<8x8xf32> to vector<8x8xbf16>
    %cst_47 = arith.constant dense<0.000000e+00> : vector<8x8xf32>
    %138 = tpu.matmul %137, %128, %cst_47 {dimension_numbers = #tpu.dot_dimension_numbers<[1], [0], [0], [1], [0, 0, 1, 1], [], []>} : vector<8x8xbf16>, vector<8x8xbf16>, vector<8x8xf32> -> vector<8x8xf32>
    %139 = tpu.reciprocal %136 : vector<8x1xf32> -> vector<8x1xf32>
    %140 = vector.broadcast %139 : vector<8x1xf32> to vector<8x8xf32>
    %141 = arith.mulf %138, %140 : vector<8x8xf32>
    %c8_48 = arith.constant 8 : index
    %c24_49 = arith.constant 24 : index
    %142 = vector.load %arg7[%c8_48, %c24_49] : memref<16x32xf32, #tpu.memory_space<vmem>>, vector<8x8xf32>
    tpu.vector_store %arg7[%c8_48, %c24_49], %141 {strides = array<i32>} : memref<16x32xf32, #tpu.memory_space<vmem>>, vector<8x8xf32>,
    %c0_50 = arith.constant 0 : index
    %c0_51 = arith.constant 0 : index
    %143 = vector.load %arg7[%c0_50, %c0_51] : memref<16x32xf32, #tpu.memory_space<vmem>>, vector<16x32xf32>
    %144 = arith.truncf %143 : vector<16x32xf32> to vector<16x32xbf16>
    %c0_52 = arith.constant 0 : index
    %c0_53 = arith.constant 0 : index
    %145 = vector.load %arg4[%c0_52, %c0_53] : memref<32x32xbf16, #tpu.memory_space<vmem>>, vector<32x32xbf16>
    %cst_54 = arith.constant dense<0.000000e+00> : vector<16x32xf32>
    %146 = tpu.matmul %144, %145, %cst_54 {dimension_numbers = #tpu.dot_dimension_numbers<[1], [0], [0], [1], [0, 0, 1, 1], [], []>} : vector<16x32xbf16>, vector<32x32xbf16>, vector<16x32xf32> -> vector<16x32xf32>
    %c0_55 = arith.constant 0 : index
    %c0_56 = arith.constant 0 : index
    %147 = vector.load %arg5[%c0_55, %c0_56] : memref<1x32xf32, #tpu.memory_space<vmem>>, vector<1x32xf32>
    %148 = vector.broadcast %147 : vector<1x32xf32> to vector<16x32xf32>
    %149 = arith.addf %146, %148 : vector<16x32xf32>
    %c0_57 = arith.constant 0 : index
    %c0_58 = arith.constant 0 : index
    %150 = vector.load %arg6[%c0_57, %c0_58] : memref<16x32xf32, #tpu.memory_space<vmem>>, vector<16x32xf32>
    tpu.vector_store %arg6[%c0_57, %c0_58], %149 {strides = array<i32>} : memref<16x32xf32, #tpu.memory_space<vmem>>, vector<16x32xf32>,
    return
  }
  func.func @transform_0(%arg0: i32) -> (i32, i32) {
    %c0_i32 = arith.constant 0 : i32
    %c0_i32_0 = arith.constant 0 : i32
    return %arg0, %c0_i32 : i32, i32
  }
  func.func @transform_1(%arg0: i32) -> (i32, i32) {
    %c0_i32 = arith.constant 0 : i32
    %c0_i32_0 = arith.constant 0 : i32
    %c0_i32_1 = arith.constant 0 : i32
    return %c0_i32, %c0_i32_0 : i32, i32
  }
  func.func @transform_2(%arg0: i32) -> (i32, i32) {
    %c0_i32 = arith.constant 0 : i32
    %c0_i32_0 = arith.constant 0 : i32
    %c0_i32_1 = arith.constant 0 : i32
    return %c0_i32, %c0_i32_0 : i32, i32
  }
  func.func @transform_3(%arg0: i32) -> (i32, i32) {
    %c0_i32 = arith.constant 0 : i32
    %c0_i32_0 = arith.constant 0 : i32
    %c0_i32_1 = arith.constant 0 : i32
    return %c0_i32, %c0_i32_0 : i32, i32
  }
  func.func @transform_4(%arg0: i32) -> (i32, i32) {
    %c0_i32 = arith.constant 0 : i32
    %c0_i32_0 = arith.constant 0 : i32
    %c0_i32_1 = arith.constant 0 : i32
    return %c0_i32, %c0_i32_0 : i32, i32
  }
  func.func @transform_5(%arg0: i32) -> (i32, i32) {
    %c0_i32 = arith.constant 0 : i32
    %c0_i32_0 = arith.constant 0 : i32
    return %arg0, %c0_i32 : i32, i32
  }
}

module attributes {stable_mosaic.version = 11 : i64} {
  func.func @attention_kernel(%arg0: i32, %arg1: memref<16x32xbf16, #tpu.memory_space<vmem>>, %arg2: memref<32x96xbf16, #tpu.memory_space<vmem>>, %arg3: memref<1x96xf32, #tpu.memory_space<vmem>>, %arg4: memref<32x32xbf16, #tpu.memory_space<vmem>>, %arg5: memref<1x32xf32, #tpu.memory_space<vmem>>, %arg6: memref<16x32xf32, #tpu.memory_space<vmem>>, %arg7: memref<16x32xf32, #tpu.memory_space<vmem>>) attributes {dimension_semantics = [#tpu.dimension_semantics<parallel>], iteration_bounds = array<i64: 1>, scalar_prefetch = 0 : i64, scratch_operands = 1 : i64, tpu.core_type = #tpu.core_type<tc>, window_params = [{transform_indices = @transform_0, window_bounds = array<i64: 16, 32>}, {pipeline_mode = #tpu.pipeline_mode<synchronous>, transform_indices = @transform_1, window_bounds = array<i64: 32, 96>}, {pipeline_mode = #tpu.pipeline_mode<synchronous>, transform_indices = @transform_2, window_bounds = array<i64: 1, 96>}, {pipeline_mode = #tpu.pipeline_mode<synchronous>, transform_indices = @transform_3, window_bounds = array<i64: 32, 32>}, {pipeline_mode = #tpu.pipeline_mode<synchronous>, transform_indices = @transform_4, window_bounds = array<i64: 1, 32>}, {transform_indices = @transform_5, window_bounds = array<i64: 16, 32>}]} {
    %c0 = arith.constant 0 : index
    %c0_0 = arith.constant 0 : index
    %0 = vector.load %arg1[%c0, %c0_0] : memref<16x32xbf16, #tpu.memory_space<vmem>>, vector<16x32xbf16>
    %c0_1 = arith.constant 0 : index
    %c0_2 = arith.constant 0 : index
    %1 = vector.load %arg2[%c0_1, %c0_2] : memref<32x96xbf16, #tpu.memory_space<vmem>>, vector<32x96xbf16>
    %cst = arith.constant dense<0.000000e+00> : vector<16x96xf32>
    %2 = tpu.matmul %0, %1, %cst {dimension_numbers = #tpu.dot_dimension_numbers<[1], [0], [0], [1], [0, 0, 1, 1], [], []>} : vector<16x32xbf16>, vector<32x96xbf16>, vector<16x96xf32> -> vector<16x96xf32>
    %c0_3 = arith.constant 0 : index
    %c0_4 = arith.constant 0 : index
    %3 = vector.load %arg3[%c0_3, %c0_4] : memref<1x96xf32, #tpu.memory_space<vmem>>, vector<1x96xf32>
    %4 = vector.broadcast %3 : vector<1x96xf32> to vector<16x96xf32>
    %5 = arith.addf %2, %4 : vector<16x96xf32>
    %6 = arith.truncf %5 : vector<16x96xf32> to vector<16x96xbf16>
    %7 = vector.extract_strided_slice %6 {offsets = [0, 0], sizes = [8, 8], strides = [1, 1]} : vector<16x96xbf16> to vector<8x8xbf16>
    %8 = vector.extract_strided_slice %6 {offsets = [0, 32], sizes = [8, 8], strides = [1, 1]} : vector<16x96xbf16> to vector<8x8xbf16>
    %9 = vector.extract_strided_slice %6 {offsets = [0, 64], sizes = [8, 8], strides = [1, 1]} : vector<16x96xbf16> to vector<8x8xbf16>
    %cst_5 = arith.constant dense<0.000000e+00> : vector<8x8xf32>
    %10 = tpu.matmul %7, %8, %cst_5 {dimension_numbers = #tpu.dot_dimension_numbers<[1], [1], [0], [0], [0, 0, 1, 0], [], []>} : vector<8x8xbf16>, vector<8x8xbf16>, vector<8x8xf32> -> vector<8x8xf32>
    %cst_6 = arith.constant dense<0xFF800000> : vector<8xf32>
    %11 = vector.multi_reduction <maximumf>, %10, %cst_6 [1] : vector<8x8xf32> to vector<8xf32>
    %12 = vector.shape_cast %11 : vector<8xf32> to vector<8x1xf32>
    %13 = vector.broadcast %12 : vector<8x1xf32> to vector<8x8xf32>
    %14 = arith.subf %10, %13 : vector<8x8xf32>
    %15 = math.exp %14 : vector<8x8xf32>
    %cst_7 = arith.constant dense<0.000000e+00> : vector<8xf32>
    %16 = vector.multi_reduction <add>, %15, %cst_7 [1] : vector<8x8xf32> to vector<8xf32>
    %17 = vector.shape_cast %16 : vector<8xf32> to vector<8x1xf32>
    %18 = arith.truncf %15 : vector<8x8xf32> to vector<8x8xbf16>
    %cst_8 = arith.constant dense<0.000000e+00> : vector<8x8xf32>
    %19 = tpu.matmul %18, %9, %cst_8 {dimension_numbers = #tpu.dot_dimension_numbers<[1], [0], [0], [1], [0, 0, 1, 1], [], []>} : vector<8x8xbf16>, vector<8x8xbf16>, vector<8x8xf32> -> vector<8x8xf32>
    %20 = tpu.reciprocal %17 : vector<8x1xf32> -> vector<8x1xf32>
    %21 = vector.broadcast %20 : vector<8x1xf32> to vector<8x8xf32>
    %22 = arith.mulf %19, %21 : vector<8x8xf32>
    %c0_9 = arith.constant 0 : index
    %c0_10 = arith.constant 0 : index
    %23 = vector.load %arg7[%c0_9, %c0_10] : memref<16x32xf32, #tpu.memory_space<vmem>>, vector<8x8xf32>
    tpu.vector_store %arg7[%c0_9, %c0_10], %22 {strides = array<i32>} : memref<16x32xf32, #tpu.memory_space<vmem>>, vector<8x8xf32>,
    %24 = vector.extract_strided_slice %6 {offsets = [0, 8], sizes = [8, 8], strides = [1, 1]} : vector<16x96xbf16> to vector<8x8xbf16>
    %25 = vector.extract_strided_slice %6 {offsets = [0, 40], sizes = [8, 8], strides = [1, 1]} : vector<16x96xbf16> to vector<8x8xbf16>
    %26 = vector.extract_strided_slice %6 {offsets = [0, 72], sizes = [8, 8], strides = [1, 1]} : vector<16x96xbf16> to vector<8x8xbf16>
    %cst_11 = arith.constant dense<0.000000e+00> : vector<8x8xf32>
    %27 = tpu.matmul %24, %25, %cst_11 {dimension_numbers = #tpu.dot_dimension_numbers<[1], [1], [0], [0], [0, 0, 1, 0], [], []>} : vector<8x8xbf16>, vector<8x8xbf16>, vector<8x8xf32> -> vector<8x8xf32>
    %cst_12 = arith.constant dense<0xFF800000> : vector<8xf32>
    %28 = vector.multi_reduction <maximumf>, %27, %cst_12 [1] : vector<8x8xf32> to vector<8xf32>
    %29 = vector.shape_cast %28 : vector<8xf32> to vector<8x1xf32>
    %30 = vector.broadcast %29 : vector<8x1xf32> to vector<8x8xf32>
    %31 = arith.subf %27, %30 : vector<8x8xf32>
    %32 = math.exp %31 : vector<8x8xf32>
    %cst_13 = arith.constant dense<0.000000e+00> : vector<8xf32>
    %33 = vector.multi_reduction <add>, %32, %cst_13 [1] : vector<8x8xf32> to vector<8xf32>
    %34 = vector.shape_cast %33 : vector<8xf32> to vector<8x1xf32>
    %35 = arith.truncf %32 : vector<8x8xf32> to vector<8x8xbf16>
    %cst_14 = arith.constant dense<0.000000e+00> : vector<8x8xf32>
    %36 = tpu.matmul %35, %26, %cst_14 {dimension_numbers = #tpu.dot_dimension_numbers<[1], [0], [0], [1], [0, 0, 1, 1], [], []>} : vector<8x8xbf16>, vector<8x8xbf16>, vector<8x8xf32> -> vector<8x8xf32>
    %37 = tpu.reciprocal %34 : vector<8x1xf32> -> vector<8x1xf32>
    %38 = vector.broadcast %37 : vector<8x1xf32> to vector<8x8xf32>
    %39 = arith.mulf %36, %38 : vector<8x8xf32>
    %c0_15 = arith.constant 0 : index
    %c8 = arith.constant 8 : index
    %40 = vector.load %arg7[%c0_15, %c8] : memref<16x32xf32, #tpu.memory_space<vmem>>, vector<8x8xf32>
    tpu.vector_store %arg7[%c0_15, %c8], %39 {strides = array<i32>} : memref<16x32xf32, #tpu.memory_space<vmem>>, vector<8x8xf32>,
    %41 = vector.extract_strided_slice %6 {offsets = [0, 16], sizes = [8, 8], strides = [1, 1]} : vector<16x96xbf16> to vector<8x8xbf16>
    %42 = vector.extract_strided_slice %6 {offsets = [0, 48], sizes = [8, 8], strides = [1, 1]} : vector<16x96xbf16> to vector<8x8xbf16>
    %43 = vector.extract_strided_slice %6 {offsets = [0, 80], sizes = [8, 8], strides = [1, 1]} : vector<16x96xbf16> to vector<8x8xbf16>
    %cst_16 = arith.constant dense<0.000000e+00> : vector<8x8xf32>
    %44 = tpu.matmul %41, %42, %cst_16 {dimension_numbers = #tpu.dot_dimension_numbers<[1], [1], [0], [0], [0, 0, 1, 0], [], []>} : vector<8x8xbf16>, vector<8x8xbf16>, vector<8x8xf32> -> vector<8x8xf32>
    %cst_17 = arith.constant dense<0xFF800000> : vector<8xf32>
    %45 = vector.multi_reduction <maximumf>, %44, %cst_17 [1] : vector<8x8xf32> to vector<8xf32>
    %46 = vector.shape_cast %45 : vector<8xf32> to vector<8x1xf32>
    %47 = vector.broadcast %46 : vector<8x1xf32> to vector<8x8xf32>
    %48 = arith.subf %44, %47 : vector<8x8xf32>
    %49 = math.exp %48 : vector<8x8xf32>
    %cst_18 = arith.constant dense<0.000000e+00> : vector<8xf32>
    %50 = vector.multi_reduction <add>, %49, %cst_18 [1] : vector<8x8xf32> to vector<8xf32>
    %51 = vector.shape_cast %50 : vector<8xf32> to vector<8x1xf32>
    %52 = arith.truncf %49 : vector<8x8xf32> to vector<8x8xbf16>
    %cst_19 = arith.constant dense<0.000000e+00> : vector<8x8xf32>
    %53 = tpu.matmul %52, %43, %cst_19 {dimension_numbers = #tpu.dot_dimension_numbers<[1], [0], [0], [1], [0, 0, 1, 1], [], []>} : vector<8x8xbf16>, vector<8x8xbf16>, vector<8x8xf32> -> vector<8x8xf32>
    %54 = tpu.reciprocal %51 : vector<8x1xf32> -> vector<8x1xf32>
    %55 = vector.broadcast %54 : vector<8x1xf32> to vector<8x8xf32>
    %56 = arith.mulf %53, %55 : vector<8x8xf32>
    %c0_20 = arith.constant 0 : index
    %c16 = arith.constant 16 : index
    %57 = vector.load %arg7[%c0_20, %c16] : memref<16x32xf32, #tpu.memory_space<vmem>>, vector<8x8xf32>
    tpu.vector_store %arg7[%c0_20, %c16], %56 {strides = array<i32>} : memref<16x32xf32, #tpu.memory_space<vmem>>, vector<8x8xf32>,
    %58 = vector.extract_strided_slice %6 {offsets = [0, 24], sizes = [8, 8], strides = [1, 1]} : vector<16x96xbf16> to vector<8x8xbf16>
    %59 = vector.extract_strided_slice %6 {offsets = [0, 56], sizes = [8, 8], strides = [1, 1]} : vector<16x96xbf16> to vector<8x8xbf16>
    %60 = vector.extract_strided_slice %6 {offsets = [0, 88], sizes = [8, 8], strides = [1, 1]} : vector<16x96xbf16> to vector<8x8xbf16>
    %cst_21 = arith.constant dense<0.000000e+00> : vector<8x8xf32>
    %61 = tpu.matmul %58, %59, %cst_21 {dimension_numbers = #tpu.dot_dimension_numbers<[1], [1], [0], [0], [0, 0, 1, 0], [], []>} : vector<8x8xbf16>, vector<8x8xbf16>, vector<8x8xf32> -> vector<8x8xf32>
    %cst_22 = arith.constant dense<0xFF800000> : vector<8xf32>
    %62 = vector.multi_reduction <maximumf>, %61, %cst_22 [1] : vector<8x8xf32> to vector<8xf32>
    %63 = vector.shape_cast %62 : vector<8xf32> to vector<8x1xf32>
    %64 = vector.broadcast %63 : vector<8x1xf32> to vector<8x8xf32>
    %65 = arith.subf %61, %64 : vector<8x8xf32>
    %66 = math.exp %65 : vector<8x8xf32>
    %cst_23 = arith.constant dense<0.000000e+00> : vector<8xf32>
    %67 = vector.multi_reduction <add>, %66, %cst_23 [1] : vector<8x8xf32> to vector<8xf32>
    %68 = vector.shape_cast %67 : vector<8xf32> to vector<8x1xf32>
    %69 = arith.truncf %66 : vector<8x8xf32> to vector<8x8xbf16>
    %cst_24 = arith.constant dense<0.000000e+00> : vector<8x8xf32>
    %70 = tpu.matmul %69, %60, %cst_24 {dimension_numbers = #tpu.dot_dimension_numbers<[1], [0], [0], [1], [0, 0, 1, 1], [], []>} : vector<8x8xbf16>, vector<8x8xbf16>, vector<8x8xf32> -> vector<8x8xf32>
    %71 = tpu.reciprocal %68 : vector<8x1xf32> -> vector<8x1xf32>
    %72 = vector.broadcast %71 : vector<8x1xf32> to vector<8x8xf32>
    %73 = arith.mulf %70, %72 : vector<8x8xf32>
    %c0_25 = arith.constant 0 : index
    %c24 = arith.constant 24 : index
    %74 = vector.load %arg7[%c0_25, %c24] : memref<16x32xf32, #tpu.memory_space<vmem>>, vector<8x8xf32>
    tpu.vector_store %arg7[%c0_25, %c24], %73 {strides = array<i32>} : memref<16x32xf32, #tpu.memory_space<vmem>>, vector<8x8xf32>,
    %75 = vector.extract_strided_slice %6 {offsets = [8, 0], sizes = [8, 8], strides = [1, 1]} : vector<16x96xbf16> to vector<8x8xbf16>
    %76 = vector.extract_strided_slice %6 {offsets = [8, 32], sizes = [8, 8], strides = [1, 1]} : vector<16x96xbf16> to vector<8x8xbf16>
    %77 = vector.extract_strided_slice %6 {offsets = [8, 64], sizes = [8, 8], strides = [1, 1]} : vector<16x96xbf16> to vector<8x8xbf16>
    %cst_26 = arith.constant dense<0.000000e+00> : vector<8x8xf32>
    %78 = tpu.matmul %75, %76, %cst_26 {dimension_numbers = #tpu.dot_dimension_numbers<[1], [1], [0], [0], [0, 0, 1, 0], [], []>} : vector<8x8xbf16>, vector<8x8xbf16>, vector<8x8xf32> -> vector<8x8xf32>
    %cst_27 = arith.constant dense<0xFF800000> : vector<8xf32>
    %79 = vector.multi_reduction <maximumf>, %78, %cst_27 [1] : vector<8x8xf32> to vector<8xf32>
    %80 = vector.shape_cast %79 : vector<8xf32> to vector<8x1xf32>
    %81 = vector.broadcast %80 : vector<8x1xf32> to vector<8x8xf32>
    %82 = arith.subf %78, %81 : vector<8x8xf32>
    %83 = math.exp %82 : vector<8x8xf32>
    %cst_28 = arith.constant dense<0.000000e+00> : vector<8xf32>
    %84 = vector.multi_reduction <add>, %83, %cst_28 [1] : vector<8x8xf32> to vector<8xf32>
    %85 = vector.shape_cast %84 : vector<8xf32> to vector<8x1xf32>
    %86 = arith.truncf %83 : vector<8x8xf32> to vector<8x8xbf16>
    %cst_29 = arith.constant dense<0.000000e+00> : vector<8x8xf32>
    %87 = tpu.matmul %86, %77, %cst_29 {dimension_numbers = #tpu.dot_dimension_numbers<[1], [0], [0], [1], [0, 0, 1, 1], [], []>} : vector<8x8xbf16>, vector<8x8xbf16>, vector<8x8xf32> -> vector<8x8xf32>
    %88 = tpu.reciprocal %85 : vector<8x1xf32> -> vector<8x1xf32>
    %89 = vector.broadcast %88 : vector<8x1xf32> to vector<8x8xf32>
    %90 = arith.mulf %87, %89 : vector<8x8xf32>
    %c8_30 = arith.constant 8 : index
    %c0_31 = arith.constant 0 : index
    %91 = vector.load %arg7[%c8_30, %c0_31] : memref<16x32xf32, #tpu.memory_space<vmem>>, vector<8x8xf32>
    tpu.vector_store %arg7[%c8_30, %c0_31], %90 {strides = array<i32>} : memref<16x32xf32, #tpu.memory_space<vmem>>, vector<8x8xf32>,
    %92 = vector.extract_strided_slice %6 {offsets = [8, 8], sizes = [8, 8], strides = [1, 1]} : vector<16x96xbf16> to vector<8x8xbf16>
    %93 = vector.extract_strided_slice %6 {offsets = [8, 40], sizes = [8, 8], strides = [1, 1]} : vector<16x96xbf16> to vector<8x8xbf16>
    %94 = vector.extract_strided_slice %6 {offsets = [8, 72], sizes = [8, 8], strides = [1, 1]} : vector<16x96xbf16> to vector<8x8xbf16>
    %cst_32 = arith.constant dense<0.000000e+00> : vector<8x8xf32>
    %95 = tpu.matmul %92, %93, %cst_32 {dimension_numbers = #tpu.dot_dimension_numbers<[1], [1], [0], [0], [0, 0, 1, 0], [], []>} : vector<8x8xbf16>, vector<8x8xbf16>, vector<8x8xf32> -> vector<8x8xf32>
    %cst_33 = arith.constant dense<0xFF800000> : vector<8xf32>
    %96 = vector.multi_reduction <maximumf>, %95, %cst_33 [1] : vector<8x8xf32> to vector<8xf32>
    %97 = vector.shape_cast %96 : vector<8xf32> to vector<8x1xf32>
    %98 = vector.broadcast %97 : vector<8x1xf32> to vector<8x8xf32>
    %99 = arith.subf %95, %98 : vector<8x8xf32>
    %100 = math.exp %99 : vector<8x8xf32>
    %cst_34 = arith.constant dense<0.000000e+00> : vector<8xf32>
    %101 = vector.multi_reduction <add>, %100, %cst_34 [1] : vector<8x8xf32> to vector<8xf32>
    %102 = vector.shape_cast %101 : vector<8xf32> to vector<8x1xf32>
    %103 = arith.truncf %100 : vector<8x8xf32> to vector<8x8xbf16>
    %cst_35 = arith.constant dense<0.000000e+00> : vector<8x8xf32>
    %104 = tpu.matmul %103, %94, %cst_35 {dimension_numbers = #tpu.dot_dimension_numbers<[1], [0], [0], [1], [0, 0, 1, 1], [], []>} : vector<8x8xbf16>, vector<8x8xbf16>, vector<8x8xf32> -> vector<8x8xf32>
    %105 = tpu.reciprocal %102 : vector<8x1xf32> -> vector<8x1xf32>
    %106 = vector.broadcast %105 : vector<8x1xf32> to vector<8x8xf32>
    %107 = arith.mulf %104, %106 : vector<8x8xf32>
    %c8_36 = arith.constant 8 : index
    %c8_37 = arith.constant 8 : index
    %108 = vector.load %arg7[%c8_36, %c8_37] : memref<16x32xf32, #tpu.memory_space<vmem>>, vector<8x8xf32>
    tpu.vector_store %arg7[%c8_36, %c8_37], %107 {strides = array<i32>} : memref<16x32xf32, #tpu.memory_space<vmem>>, vector<8x8xf32>,
    %109 = vector.extract_strided_slice %6 {offsets = [8, 16], sizes = [8, 8], strides = [1, 1]} : vector<16x96xbf16> to vector<8x8xbf16>
    %110 = vector.extract_strided_slice %6 {offsets = [8, 48], sizes = [8, 8], strides = [1, 1]} : vector<16x96xbf16> to vector<8x8xbf16>
    %111 = vector.extract_strided_slice %6 {offsets = [8, 80], sizes = [8, 8], strides = [1, 1]} : vector<16x96xbf16> to vector<8x8xbf16>
    %cst_38 = arith.constant dense<0.000000e+00> : vector<8x8xf32>
    %112 = tpu.matmul %109, %110, %cst_38 {dimension_numbers = #tpu.dot_dimension_numbers<[1], [1], [0], [0], [0, 0, 1, 0], [], []>} : vector<8x8xbf16>, vector<8x8xbf16>, vector<8x8xf32> -> vector<8x8xf32>
    %cst_39 = arith.constant dense<0xFF800000> : vector<8xf32>
    %113 = vector.multi_reduction <maximumf>, %112, %cst_39 [1] : vector<8x8xf32> to vector<8xf32>
    %114 = vector.shape_cast %113 : vector<8xf32> to vector<8x1xf32>
    %115 = vector.broadcast %114 : vector<8x1xf32> to vector<8x8xf32>
    %116 = arith.subf %112, %115 : vector<8x8xf32>
    %117 = math.exp %116 : vector<8x8xf32>
    %cst_40 = arith.constant dense<0.000000e+00> : vector<8xf32>
    %118 = vector.multi_reduction <add>, %117, %cst_40 [1] : vector<8x8xf32> to vector<8xf32>
    %119 = vector.shape_cast %118 : vector<8xf32> to vector<8x1xf32>
    %120 = arith.truncf %117 : vector<8x8xf32> to vector<8x8xbf16>
    %cst_41 = arith.constant dense<0.000000e+00> : vector<8x8xf32>
    %121 = tpu.matmul %120, %111, %cst_41 {dimension_numbers = #tpu.dot_dimension_numbers<[1], [0], [0], [1], [0, 0, 1, 1], [], []>} : vector<8x8xbf16>, vector<8x8xbf16>, vector<8x8xf32> -> vector<8x8xf32>
    %122 = tpu.reciprocal %119 : vector<8x1xf32> -> vector<8x1xf32>
    %123 = vector.broadcast %122 : vector<8x1xf32> to vector<8x8xf32>
    %124 = arith.mulf %121, %123 : vector<8x8xf32>
    %c8_42 = arith.constant 8 : index
    %c16_43 = arith.constant 16 : index
    %125 = vector.load %arg7[%c8_42, %c16_43] : memref<16x32xf32, #tpu.memory_space<vmem>>, vector<8x8xf32>
    tpu.vector_store %arg7[%c8_42, %c16_43], %124 {strides = array<i32>} : memref<16x32xf32, #tpu.memory_space<vmem>>, vector<8x8xf32>,
    %126 = vector.extract_strided_slice %6 {offsets = [8, 24], sizes = [8, 8], strides = [1, 1]} : vector<16x96xbf16> to vector<8x8xbf16>
    %127 = vector.extract_strided_slice %6 {offsets = [8, 56], sizes = [8, 8], strides = [1, 1]} : vector<16x96xbf16> to vector<8x8xbf16>
    %128 = vector.extract_strided_slice %6 {offsets = [8, 88], sizes = [8, 8], strides = [1, 1]} : vector<16x96xbf16> to vector<8x8xbf16>
    %cst_44 = arith.constant dense<0.000000e+00> : vector<8x8xf32>
    %129 = tpu.matmul %126, %127, %cst_44 {dimension_numbers = #tpu.dot_dimension_numbers<[1], [1], [0], [0], [0, 0, 1, 0], [], []>} : vector<8x8xbf16>, vector<8x8xbf16>, vector<8x8xf32> -> vector<8x8xf32>
    %cst_45 = arith.constant dense<0xFF800000> : vector<8xf32>
    %130 = vector.multi_reduction <maximumf>, %129, %cst_45 [1] : vector<8x8xf32> to vector<8xf32>
    %131 = vector.shape_cast %130 : vector<8xf32> to vector<8x1xf32>
    %132 = vector.broadcast %131 : vector<8x1xf32> to vector<8x8xf32>
    %133 = arith.subf %129, %132 : vector<8x8xf32>
    %134 = math.exp %133 : vector<8x8xf32>
    %cst_46 = arith.constant dense<0.000000e+00> : vector<8xf32>
    %135 = vector.multi_reduction <add>, %134, %cst_46 [1] : vector<8x8xf32> to vector<8xf32>
    %136 = vector.shape_cast %135 : vector<8xf32> to vector<8x1xf32>
    %137 = arith.truncf %134 : vector<8x8xf32> to vector<8x8xbf16>
    %cst_47 = arith.constant dense<0.000000e+00> : vector<8x8xf32>
    %138 = tpu.matmul %137, %128, %cst_47 {dimension_numbers = #tpu.dot_dimension_numbers<[1], [0], [0], [1], [0, 0, 1, 1], [], []>} : vector<8x8xbf16>, vector<8x8xbf16>, vector<8x8xf32> -> vector<8x8xf32>
    %139 = tpu.reciprocal %136 : vector<8x1xf32> -> vector<8x1xf32>
    %140 = vector.broadcast %139 : vector<8x1xf32> to vector<8x8xf32>
    %141 = arith.mulf %138, %140 : vector<8x8xf32>
    %c8_48 = arith.constant 8 : index
    %c24_49 = arith.constant 24 : index
    %142 = vector.load %arg7[%c8_48, %c24_49] : memref<16x32xf32, #tpu.memory_space<vmem>>, vector<8x8xf32>
    tpu.vector_store %arg7[%c8_48, %c24_49], %141 {strides = array<i32>} : memref<16x32xf32, #tpu.memory_space<vmem>>, vector<8x8xf32>,
    %c0_50 = arith.constant 0 : index
    %c0_51 = arith.constant 0 : index
    %143 = vector.load %arg7[%c0_50, %c0_51] : memref<16x32xf32, #tpu.memory_space<vmem>>, vector<16x32xf32>
    %144 = arith.truncf %143 : vector<16x32xf32> to vector<16x32xbf16>
    %c0_52 = arith.constant 0 : index
    %c0_53 = arith.constant 0 : index
    %145 = vector.load %arg4[%c0_52, %c0_53] : memref<32x32xbf16, #tpu.memory_space<vmem>>, vector<32x32xbf16>
    %cst_54 = arith.constant dense<0.000000e+00> : vector<16x32xf32>
    %146 = tpu.matmul %144, %145, %cst_54 {dimension_numbers = #tpu.dot_dimension_numbers<[1], [0], [0], [1], [0, 0, 1, 1], [], []>} : vector<16x32xbf16>, vector<32x32xbf16>, vector<16x32xf32> -> vector<16x32xf32>
    %c0_55 = arith.constant 0 : index
    %c0_56 = arith.constant 0 : index
    %147 = vector.load %arg5[%c0_55, %c0_56] : memref<1x32xf32, #tpu.memory_space<vmem>>, vector<1x32xf32>
    %148 = vector.broadcast %147 : vector<1x32xf32> to vector<16x32xf32>
    %149 = arith.addf %146, %148 : vector<16x32xf32>
    %c0_57 = arith.constant 0 : index
    %c0_58 = arith.constant 0 : index
    %150 = vector.load %arg6[%c0_57, %c0_58] : memref<16x32xf32, #tpu.memory_space<vmem>>, vector<16x32xf32>
    tpu.vector_store %arg6[%c0_57, %c0_58], %149 {strides = array<i32>} : memref<16x32xf32, #tpu.memory_space<vmem>>, vector<16x32xf32>,
    return
  }
  func.func @transform_0(%arg0: i32) -> (i32, i32) {
    %c0_i32 = arith.constant 0 : i32
    %c0_i32_0 = arith.constant 0 : i32
    return %arg0, %c0_i32 : i32, i32
  }
  func.func @transform_1(%arg0: i32) -> (i32, i32) {
    %c0_i32 = arith.constant 0 : i32
    %c0_i32_0 = arith.constant 0 : i32
    %c0_i32_1 = arith.constant 0 : i32
    return %c0_i32, %c0_i32_0 : i32, i32
  }
  func.func @transform_2(%arg0: i32) -> (i32, i32) {
    %c0_i32 = arith.constant 0 : i32
    %c0_i32_0 = arith.constant 0 : i32
    %c0_i32_1 = arith.constant 0 : i32
    return %c0_i32, %c0_i32_0 : i32, i32
  }
  func.func @transform_3(%arg0: i32) -> (i32, i32) {
    %c0_i32 = arith.constant 0 : i32
    %c0_i32_0 = arith.constant 0 : i32
    %c0_i32_1 = arith.constant 0 : i32
    return %c0_i32, %c0_i32_0 : i32, i32
  }
  func.func @transform_4(%arg0: i32) -> (i32, i32) {
    %c0_i32 = arith.constant 0 : i32
    %c0_i32_0 = arith.constant 0 : i32
    %c0_i32_1 = arith.constant 0 : i32
    return %c0_i32, %c0_i32_0 : i32, i32
  }
  func.func @transform_5(%arg0: i32) -> (i32, i32) {
    %c0_i32 = arith.constant 0 : i32
    %c0_i32_0 = arith.constant 0 : i32
    return %arg0, %c0_i32 : i32, i32
  }
}

</mosaic_0001>

<llo_original>
// kernel: tpu_custom_call.1
$region0: #{tpu_custom_call.1}
  #allocation0 [shape = 'u32[]', space=smem, size = 0x4, offset = 0x4, fixed_abs, tag = 'smem constant byte address 0x4 - core index']
  #allocation1 [shape = 'u32[72,128]{1,0:T(1,128)}', space=vmem, size = 0x9000, scoped, tag = 'internal scratch']
  #allocation2 [shape = 'f32[16,32]{1,0:T(8,128)}', space=vmem, size = 0x2000, scoped, tag = 'scratch operand']
  %s0 = inlined_call_operand.hbm [shape: bf16[16,32], index: 0, kind: input, shape index: {}]
  %s1 = inlined_call_operand.hbm [shape: bf16[32,96], index: 1, kind: input, shape index: {}]
  %s2 = inlined_call_operand.vmem [shape: f32[1,96], index: 2, kind: input, shape index: {}]
  %s3 = inlined_call_operand.hbm [shape: bf16[32,32], index: 3, kind: input, shape index: {}]
  %s4 = inlined_call_operand.vmem [shape: f32[1,32], index: 4, kind: input, shape index: {}]
  %s5 = inlined_call_operand.hbm [shape: f32[16,32], index: 5, kind: output, shape index: {}]
  %s6 = sld [smem:[#allocation0]]
  $region42: #{tpu_custom_call.1} parent=0
    _
  %s8 = ssub.s32 1, %s6
  %s9 = scalar_select 0, %s8, %s6
  $region1: #{tpu_custom_call.1} parent=0
    #allocation3 [shape = 'u8[4096]{0}', space=vmem, size = 0x1000, scoped, tag = 'input window, operand 0, single buffered']
    #allocation4 [shape = 's32[1]{0}', space=sflag, size = 0x4, scoped, tag = 'scoped memory for tpu_custom_call.1']
    #allocation5 [shape = 's32[1]{0}', space=sflag, size = 0x4, scoped, tag = 'scoped memory for tpu_custom_call.1']
    #allocation6 [shape = 'u8[8192]{0}', space=vmem, size = 0x2000, scoped, tag = 'input window, operand 1, single buffered']
    #allocation7 [shape = 's32[1]{0}', space=sflag, size = 0x4, scoped, tag = 'scoped memory for tpu_custom_call.1']
    #allocation8 [shape = 'u8[8192]{0}', space=vmem, size = 0x2000, scoped, tag = 'input window, operand 3, single buffered']
    #allocation9 [shape = 'u8[8192]{0}', space=vmem, size = 0x2000, scoped, tag = 'output window, operand 0, single buffered']
    %10 = vsyncpa [#allocation4], 0
    %11 = vsyncpa [#allocation7], 0
    %12 = vsyncpa [#allocation5], 0
    // Predicated region
    $region2: #{tpu_custom_call.1} parent=1 // pred_check
      _
    $region3: #{tpu_custom_call.1} parent=1 // pred_check_branch
      %14 = sbr.rel (0) target = $region5
    $region4: #{tpu_custom_call.1} parent=1 // pred_region
      %16 = vsyncadd [#allocation4], 0
      %s17 = sshll.u32 %s0, 4
      %s18 = int_to_ptr.hbm [resolvable:$true] %s17
      %s19 = sshll.u32 [#allocation3], 4
      %s20 = int_to_ptr.vmem [resolvable:$true] %s19
      %25 = dma.hbm_to_vmem [thread:$0]  %s18, 128, %s20, [#allocation4], 64, 64, 4
    $region5: #{tpu_custom_call.1} parent=1 // pred_fallthru
      _
    // Predicated region
    $region6: #{tpu_custom_call.1} parent=1 // pred_check
      _
    $region7: #{tpu_custom_call.1} parent=1 // pred_check_branch
      %27 = sbr.rel (0) target = $region9
    $region8: #{tpu_custom_call.1} parent=1 // pred_region
      %29 = vsyncadd [#allocation7], 0
      %s30 = sshll.u32 %s1, 4
      %s31 = int_to_ptr.hbm [resolvable:$true] %s30
      %s32 = sshll.u32 [#allocation6], 4
      %s33 = int_to_ptr.vmem [resolvable:$true] %s32
      %38 = dma.hbm_to_vmem [thread:$0]  %s31, 256, %s33, [#allocation7], 64, 64, 4
    $region9: #{tpu_custom_call.1} parent=1 // pred_fallthru
      _
    // Predicated region
    $region10: #{tpu_custom_call.1} parent=1 // pred_check
      _
    $region11: #{tpu_custom_call.1} parent=1 // pred_check_branch
      %40 = sbr.rel (0) target = $region13
    $region12: #{tpu_custom_call.1} parent=1 // pred_region
      _
    $region13: #{tpu_custom_call.1} parent=1 // pred_fallthru
      _
    // Predicated region
    $region14: #{tpu_custom_call.1} parent=1 // pred_check
      _
    $region15: #{tpu_custom_call.1} parent=1 // pred_check_branch
      %42 = sbr.rel (0) target = $region17
    $region16: #{tpu_custom_call.1} parent=1 // pred_region
      %44 = vsyncadd [#allocation7], 0
      %s45 = sshll.u32 %s3, 4
      %s46 = int_to_ptr.hbm [resolvable:$true] %s45
      %s47 = sshll.u32 [#allocation8], 4
      %s48 = int_to_ptr.vmem [resolvable:$true] %s47
      %53 = dma.hbm_to_vmem [thread:$0]  %s46, 256, %s48, [#allocation7], 64, 64, 4
    $region17: #{tpu_custom_call.1} parent=1 // pred_fallthru
      _
    // Predicated region
    $region18: #{tpu_custom_call.1} parent=1 // pred_check
      _
    $region19: #{tpu_custom_call.1} parent=1 // pred_check_branch
      %55 = sbr.rel (0) target = $region21
    $region20: #{tpu_custom_call.1} parent=1 // pred_region
      _
    $region21: #{tpu_custom_call.1} parent=1 // pred_fallthru
      _
    // Predicated region
    $region22: #{tpu_custom_call.1} parent=1 // pred_check
      _
    $region23: #{tpu_custom_call.1} parent=1 // pred_check_branch
      %57 = sbr.rel (0) target = $region25
    $region24: #{tpu_custom_call.1} parent=1 // pred_region
      %59 = dma.done [#allocation4], 128
    $region25: #{tpu_custom_call.1} parent=1 // pred_fallthru
      _
    // Predicated region
    $region26: #{tpu_custom_call.1} parent=1 // pred_check
      _
    $region27: #{tpu_custom_call.1} parent=1 // pred_check_branch
      %61 = sbr.rel (0) target = $region29
    $region28: #{tpu_custom_call.1} parent=1 // pred_region
      %63 = dma.done [#allocation7], 256
    $region29: #{tpu_custom_call.1} parent=1 // pred_fallthru
      _
    // Predicated region
    $region30: #{tpu_custom_call.1} parent=1 // pred_check
      _
    $region31: #{tpu_custom_call.1} parent=1 // pred_check_branch
      %65 = sbr.rel (0) target = $region33
    $region32: #{tpu_custom_call.1} parent=1 // pred_region
      %67 = dma.done [#allocation7], 256
    $region33: #{tpu_custom_call.1} parent=1 // pred_fallthru
      _
    %v69 = vld [vmem:[#allocation3] sm:$0xf]
    %v70 = vld [vmem:[#allocation3 + $0x4] sm:$0xf]
    %v71 = vld [vmem:[#allocation6] sm:$0xf]
    %v72 = vld [vmem:[#allocation6 + $0x4] sm:$0xf]
    %v73 = vld [vmem:[#allocation6 + $0x8] sm:$0xf]
    %v74 = vld [vmem:[#allocation6 + $0xc] sm:$0xf]
    %v75 = vld [vmem:[%s2] sm:$0x1]
    %v77 = vperm.slane %v75, 0
    %v81 = vunpack.c.l.b16 %v69
    %v82 = vunpack.c.l.b16 %v70
    %v83 = vpack.c.b16 %v82, %v81
    %v88 = vunpack.c.l.b16 %v71
    %v89 = vunpack.c.l.b16 %v72
    %v90 = vunpack.c.l.b16 %v73
    %v91 = vunpack.c.l.b16 %v74
    %v92 = vpack.c.b16 %v89, %v88
    %v93 = vpack.c.b16 %v91, %v90
    %vm96 = vcmask 261120
    %v98 = vsel %vm96, %v83, 0
    %100 = vmatpush.bf16.msra.mxu0 0
    %101 = vmatpush.bf16.msra.mxu0 0
    %102 = vmatpush.bf16.msra.mxu0 0
    %103 = vmatpush.bf16.msra.mxu0 0
    %104 = vmatpush.bf16.msra.mxu0 0
    %105 = vmatpush.bf16.msra.mxu0 0
    %106 = vmatpush.bf16.msra.mxu0 %v93
    %107 = vmatpush.bf16.msra.mxu0 %v92
    %108 = vmatmul.bf16.gmra.mxu0 %v98
    %v109 = vpop.f32.mrf.mxu0
    %v110 = vadd.f32 %v77, %v109
    %v111 = vpop.f32.mrf.mxu0
    %v112 = vadd.f32 %v77, %v111
    %113 = vdwg.mxu0
    %v114 = vpack.c.bf16 %v110, %v110
    %v115 = vpack.c.bf16 %v112, %v112
    %v117 = vunpack.c.l.b16 %v114
    %v118 = vpack.c.b16 %v117, %v117
    %119 = vrot.lane.b32.xlu0 %v118, 96
    %v120 = vpop.permute.xlu0 %119
    %vm121 = vcmask 64512
    %v123 = vsel %vm121, %v114, 0
    %v126 = vsel %vm121, %v120, 0
    %128 = vmatpush.bf16.xpose.msra.mxu0 0
    %129 = vmatpush.bf16.xpose.msra.mxu0 0
    %130 = vmatpush.bf16.xpose.msra.mxu0 0
    %131 = vmatpush.bf16.xpose.msra.mxu0 0
    %132 = vmatpush.bf16.xpose.msra.mxu0 0
    %133 = vmatpush.bf16.xpose.msra.mxu0 0
    %134 = vmatpush.bf16.xpose.msra.mxu0 0
    %135 = vmatpush.bf16.xpose.msra.mxu0 %v126
    %136 = vmatmul.bf16.gmra.mxu0 %v123
    %v137 = vpop.f32.mrf.mxu0
    %v138 = vadd.f32 0.0, %v137
    %v139 = vpop.f32.mrf.mxu0
    %140 = vdwg.mxu0
    %v141 = vsel %vm121, %v138, -inf
    %142 = vmax.xlane.f32.xlu0 %v141
    %v143 = vpop.xlane.xlu0 %142
    %v144 = vsub.f32 %v138, %v143
    %v145 = vmul.f32 %v144, 1.442695
    %v146 = vpow.pop %v145
    %v147 = vsel %vm121, %v146, 0.0
    %148 = vadd.xlane.f32.xlu0 %v147
    %v149 = vpop.xlane.xlu0 %148
    %v150 = vpack.c.bf16 %v146, %v146
    %151 = vrot.lane.b32.xlu0 %v118, 64
    %v152 = vpop.permute.xlu0 %151
    %v154 = vsel %vm121, %v150, 0
    %vm156 = vcmask 1043456
    %v158 = vsel %vm156, %v152, 0
    %160 = vmatpush.bf16.msra.mxu0 0
    %161 = vmatpush.bf16.msra.mxu0 0
    %162 = vmatpush.bf16.msra.mxu0 0
    %163 = vmatpush.bf16.msra.mxu0 0
    %164 = vmatpush.bf16.msra.mxu0 0
    %165 = vmatpush.bf16.msra.mxu0 0
    %166 = vmatpush.bf16.msra.mxu0 0
    %167 = vmatpush.bf16.msra.mxu0 %v158
    %168 = vmatmul.bf16.gmra.mxu0 %v154
    %v169 = vpop.f32.mrf.mxu0
    %v170 = vadd.f32 0.0, %v169
    %v171 = vpop.f32.mrf.mxu0
    %172 = vdwg.mxu0
    %v173 = vrcp.pop %v149
    %v174 = vmul.f32 %v149, %v173
    %v175 = vsub.f32 1.0, %v174
    %v176 = vmul.f32 %v173, %v175
    %v177 = vadd.f32 %v173, %v176
    %vm178 = vweird.f32 %v149
    %vm179 = vweird.f32 %v173
    %vm180 = vmor %vm178, %vm179
    %v181 = vsel %vm180, %v173, %v177
    %v182 = vand.u32 2147483647, %v149
    %vm183 = vcmp.eq.f32.partialorder %v182, 8.507059e+37
    %v184 = vand.u32 %v149, 2147483648
    %v185 = vor.u32 1.1754944e-38, %v184
    %v186 = vsel %vm183, %v185, %v181
    %v187 = vmul.f32 %v170, %v186
    %188 = vst.msk [vmem:[#allocation2] sm:$0xff] %vm121, %v187
    %189 = vrot.lane.b32.xlu0 %v118, 120
    %v190 = vpop.permute.xlu0 %189
    %191 = vrot.lane.b32.xlu0 %v118, 88
    %v192 = vpop.permute.xlu0 %191
    %v194 = vsel %vm121, %v190, 0
    %v197 = vsel %vm121, %v192, 0
    %199 = vmatpush.bf16.xpose.msra.mxu0 0
    %200 = vmatpush.bf16.xpose.msra.mxu0 0
    %201 = vmatpush.bf16.xpose.msra.mxu0 0
    %202 = vmatpush.bf16.xpose.msra.mxu0 0
    %203 = vmatpush.bf16.xpose.msra.mxu0 0
    %204 = vmatpush.bf16.xpose.msra.mxu0 0
    %205 = vmatpush.bf16.xpose.msra.mxu0 0
    %206 = vmatpush.bf16.xpose.msra.mxu0 %v197
    %207 = vmatmul.bf16.gmra.mxu0 %v194
    %v208 = vpop.f32.mrf.mxu0
    %v209 = vadd.f32 0.0, %v208
    %v210 = vpop.f32.mrf.mxu0
    %211 = vdwg.mxu0
    %v212 = vsel %vm121, %v209, -inf
    %213 = vmax.xlane.f32.xlu0 %v212
    %v214 = vpop.xlane.xlu0 %213
    %v215 = vsub.f32 %v209, %v214
    %v216 = vmul.f32 %v215, 1.442695
    %v217 = vpow.pop %v216
    %v218 = vsel %vm121, %v217, 0.0
    %219 = vadd.xlane.f32.xlu0 %v218
    %v220 = vpop.xlane.xlu0 %219
    %v221 = vpack.c.bf16 %v217, %v217
    %222 = vrot.lane.b32.xlu0 %v118, 56
    %v223 = vpop.permute.xlu0 %222
    %v225 = vsel %vm121, %v221, 0
    %v228 = vsel %vm156, %v223, 0
    %230 = vmatpush.bf16.msra.mxu0 0
    %231 = vmatpush.bf16.msra.mxu0 0
    %232 = vmatpush.bf16.msra.mxu0 0
    %233 = vmatpush.bf16.msra.mxu0 0
    %234 = vmatpush.bf16.msra.mxu0 0
    %235 = vmatpush.bf16.msra.mxu0 0
    %236 = vmatpush.bf16.msra.mxu0 0
    %237 = vmatpush.bf16.msra.mxu0 %v228
    %238 = vmatmul.bf16.gmra.mxu0 %v225
    %v239 = vpop.f32.mrf.mxu0
    %v240 = vadd.f32 0.0, %v239
    %v241 = vpop.f32.mrf.mxu0
    %242 = vdwg.mxu0
    %v243 = vrcp.pop %v220
    %v244 = vmul.f32 %v220, %v243
    %v245 = vsub.f32 1.0, %v244
    %v246 = vmul.f32 %v243, %v245
    %v247 = vadd.f32 %v243, %v246
    %vm248 = vweird.f32 %v220
    %vm249 = vweird.f32 %v243
    %vm250 = vmor %vm248, %vm249
    %v251 = vsel %vm250, %v243, %v247
    %v252 = vand.u32 2147483647, %v220
    %vm253 = vcmp.eq.f32.partialorder %v252, 8.507059e+37
    %v254 = vand.u32 %v220, 2147483648
    %v255 = vor.u32 1.1754944e-38, %v254
    %v256 = vsel %vm253, %v255, %v251
    %v257 = vmul.f32 %v240, %v256
    %259 = vrot.lane.b32.xlu0 %v257, 8
    %v260 = vpop.permute.xlu0 %259
    %vm262 = vcmask 130112
    %263 = vst.msk [vmem:[#allocation2] sm:$0xff] %vm262, %v260
    %264 = vrot.lane.b32.xlu0 %v118, 112
    %v265 = vpop.permute.xlu0 %264
    %266 = vrot.lane.b32.xlu0 %v118, 80
    %v267 = vpop.permute.xlu0 %266
    %v269 = vsel %vm121, %v265, 0
    %v272 = vsel %vm121, %v267, 0
    %274 = vmatpush.bf16.xpose.msra.mxu0 0
    %275 = vmatpush.bf16.xpose.msra.mxu0 0
    %276 = vmatpush.bf16.xpose.msra.mxu0 0
    %277 = vmatpush.bf16.xpose.msra.mxu0 0
    %278 = vmatpush.bf16.xpose.msra.mxu0 0
    %279 = vmatpush.bf16.xpose.msra.mxu0 0
    %280 = vmatpush.bf16.xpose.msra.mxu0 0
    %281 = vmatpush.bf16.xpose.msra.mxu0 %v272
    %282 = vmatmul.bf16.gmra.mxu0 %v269
    %v283 = vpop.f32.mrf.mxu0
    %v284 = vadd.f32 0.0, %v283
    %v285 = vpop.f32.mrf.mxu0
    %286 = vdwg.mxu0
    %v287 = vsel %vm121, %v284, -inf
    %288 = vmax.xlane.f32.xlu0 %v287
    %v289 = vpop.xlane.xlu0 %288
    %v290 = vsub.f32 %v284, %v289
    %v291 = vmul.f32 %v290, 1.442695
    %v292 = vpow.pop %v291
    %v293 = vsel %vm121, %v292, 0.0
    %294 = vadd.xlane.f32.xlu0 %v293
    %v295 = vpop.xlane.xlu0 %294
    %v296 = vpack.c.bf16 %v292, %v292
    %297 = vrot.lane.b32.xlu0 %v118, 48
    %v298 = vpop.permute.xlu0 %297
    %v300 = vsel %vm121, %v296, 0
    %v303 = vsel %vm156, %v298, 0
    %305 = vmatpush.bf16.msra.mxu0 0
    %306 = vmatpush.bf16.msra.mxu0 0
    %307 = vmatpush.bf16.msra.mxu0 0
    %308 = vmatpush.bf16.msra.mxu0 0
    %309 = vmatpush.bf16.msra.mxu0 0
    %310 = vmatpush.bf16.msra.mxu0 0
    %311 = vmatpush.bf16.msra.mxu0 0
    %312 = vmatpush.bf16.msra.mxu0 %v303
    %313 = vmatmul.bf16.gmra.mxu0 %v300
    %v314 = vpop.f32.mrf.mxu0
    %v315 = vadd.f32 0.0, %v314
    %v316 = vpop.f32.mrf.mxu0
    %317 = vdwg.mxu0
    %v318 = vrcp.pop %v295
    %v319 = vmul.f32 %v295, %v318
    %v320 = vsub.f32 1.0, %v319
    %v321 = vmul.f32 %v318, %v320
    %v322 = vadd.f32 %v318, %v321
    %vm323 = vweird.f32 %v295
    %vm324 = vweird.f32 %v318
    %vm325 = vmor %vm323, %vm324
    %v326 = vsel %vm325, %v318, %v322
    %v327 = vand.u32 2147483647, %v295
    %vm328 = vcmp.eq.f32.partialorder %v327, 8.507059e+37
    %v329 = vand.u32 %v295, 2147483648
    %v330 = vor.u32 1.1754944e-38, %v329
    %v331 = vsel %vm328, %v330, %v326
    %v332 = vmul.f32 %v315, %v331
    %334 = vrot.lane.b32.xlu0 %v332, 16
    %v335 = vpop.permute.xlu0 %334
    %vm337 = vcmask 195712
    %338 = vst.msk [vmem:[#allocation2] sm:$0xff] %vm337, %v335
    %339 = vrot.lane.b32.xlu0 %v118, 104
    %v340 = vpop.permute.xlu0 %339
    %341 = vrot.lane.b32.xlu0 %v118, 72
    %v342 = vpop.permute.xlu0 %341
    %v344 = vsel %vm121, %v340, 0
    %v347 = vsel %vm121, %v342, 0
    %349 = vmatpush.bf16.xpose.msra.mxu0 0
    %350 = vmatpush.bf16.xpose.msra.mxu0 0
    %351 = vmatpush.bf16.xpose.msra.mxu0 0
    %352 = vmatpush.bf16.xpose.msra.mxu0 0
    %353 = vmatpush.bf16.xpose.msra.mxu0 0
    %354 = vmatpush.bf16.xpose.msra.mxu0 0
    %355 = vmatpush.bf16.xpose.msra.mxu0 0
    %356 = vmatpush.bf16.xpose.msra.mxu0 %v347
    %357 = vmatmul.bf16.gmra.mxu0 %v344
    %v358 = vpop.f32.mrf.mxu0
    %v359 = vadd.f32 0.0, %v358
    %v360 = vpop.f32.mrf.mxu0
    %361 = vdwg.mxu0
    %v362 = vsel %vm121, %v359, -inf
    %363 = vmax.xlane.f32.xlu0 %v362
    %v364 = vpop.xlane.xlu0 %363
    %v365 = vsub.f32 %v359, %v364
    %v366 = vmul.f32 %v365, 1.442695
    %v367 = vpow.pop %v366
    %v368 = vsel %vm121, %v367, 0.0
    %369 = vadd.xlane.f32.xlu0 %v368
    %v370 = vpop.xlane.xlu0 %369
    %v371 = vpack.c.bf16 %v367, %v367
    %372 = vrot.lane.b32.xlu0 %v118, 40
    %v373 = vpop.permute.xlu0 %372
    %v375 = vsel %vm121, %v371, 0
    %v378 = vsel %vm156, %v373, 0
    %380 = vmatpush.bf16.msra.mxu0 0
    %381 = vmatpush.bf16.msra.mxu0 0
    %382 = vmatpush.bf16.msra.mxu0 0
    %383 = vmatpush.bf16.msra.mxu0 0
    %384 = vmatpush.bf16.msra.mxu0 0
    %385 = vmatpush.bf16.msra.mxu0 0
    %386 = vmatpush.bf16.msra.mxu0 0
    %387 = vmatpush.bf16.msra.mxu0 %v378
    %388 = vmatmul.bf16.gmra.mxu0 %v375
    %v389 = vpop.f32.mrf.mxu0
    %v390 = vadd.f32 0.0, %v389
    %v391 = vpop.f32.mrf.mxu0
    %392 = vdwg.mxu0
    %v393 = vrcp.pop %v370
    %v394 = vmul.f32 %v370, %v393
    %v395 = vsub.f32 1.0, %v394
    %v396 = vmul.f32 %v393, %v395
    %v397 = vadd.f32 %v393, %v396
    %vm398 = vweird.f32 %v370
    %vm399 = vweird.f32 %v393
    %vm400 = vmor %vm398, %vm399
    %v401 = vsel %vm400, %v393, %v397
    %v402 = vand.u32 2147483647, %v370
    %vm403 = vcmp.eq.f32.partialorder %v402, 8.507059e+37
    %v404 = vand.u32 %v370, 2147483648
    %v405 = vor.u32 1.1754944e-38, %v404
    %v406 = vsel %vm403, %v405, %v401
    %v407 = vmul.f32 %v390, %v406
    %409 = vrot.lane.b32.xlu0 %v407, 24
    %v410 = vpop.permute.xlu0 %409
    %vm412 = vcmask 261312
    %413 = vst.msk [vmem:[#allocation2] sm:$0xff] %vm412, %v410
    %v415 = vunpack.c.l.b16 %v115
    %v416 = vpack.c.b16 %v415, %v415
    %417 = vrot.lane.b32.xlu0 %v416, 96
    %v418 = vpop.permute.xlu0 %417
    %v420 = vsel %vm121, %v115, 0
    %v423 = vsel %vm121, %v418, 0
    %425 = vmatpush.bf16.xpose.msra.mxu0 0
    %426 = vmatpush.bf16.xpose.msra.mxu0 0
    %427 = vmatpush.bf16.xpose.msra.mxu0 0
    %428 = vmatpush.bf16.xpose.msra.mxu0 0
    %429 = vmatpush.bf16.xpose.msra.mxu0 0
    %430 = vmatpush.bf16.xpose.msra.mxu0 0
    %431 = vmatpush.bf16.xpose.msra.mxu0 0
    %432 = vmatpush.bf16.xpose.msra.mxu0 %v423
    %433 = vmatmul.bf16.gmra.mxu0 %v420
    %v434 = vpop.f32.mrf.mxu0
    %v435 = vadd.f32 0.0, %v434
    %v436 = vpop.f32.mrf.mxu0
    %437 = vdwg.mxu0
    %v438 = vsel %vm121, %v435, -inf
    %439 = vmax.xlane.f32.xlu0 %v438
    %v440 = vpop.xlane.xlu0 %439
    %v441 = vsub.f32 %v435, %v440
    %v442 = vmul.f32 %v441, 1.442695
    %v443 = vpow.pop %v442
    %v444 = vsel %vm121, %v443, 0.0
    %445 = vadd.xlane.f32.xlu0 %v444
    %v446 = vpop.xlane.xlu0 %445
    %v447 = vpack.c.bf16 %v443, %v443
    %448 = vrot.lane.b32.xlu0 %v416, 64
    %v449 = vpop.permute.xlu0 %448
    %v451 = vsel %vm121, %v447, 0
    %v454 = vsel %vm156, %v449, 0
    %456 = vmatpush.bf16.msra.mxu0 0
    %457 = vmatpush.bf16.msra.mxu0 0
    %458 = vmatpush.bf16.msra.mxu0 0
    %459 = vmatpush.bf16.msra.mxu0 0
    %460 = vmatpush.bf16.msra.mxu0 0
    %461 = vmatpush.bf16.msra.mxu0 0
    %462 = vmatpush.bf16.msra.mxu0 0
    %463 = vmatpush.bf16.msra.mxu0 %v454
    %464 = vmatmul.bf16.gmra.mxu0 %v451
    %v465 = vpop.f32.mrf.mxu0
    %v466 = vadd.f32 0.0, %v465
    %v467 = vpop.f32.mrf.mxu0
    %468 = vdwg.mxu0
    %v469 = vrcp.pop %v446
    %v470 = vmul.f32 %v446, %v469
    %v471 = vsub.f32 1.0, %v470
    %v472 = vmul.f32 %v469, %v471
    %v473 = vadd.f32 %v469, %v472
    %vm474 = vweird.f32 %v446
    %vm475 = vweird.f32 %v469
    %vm476 = vmor %vm474, %vm475
    %v477 = vsel %vm476, %v469, %v473
    %v478 = vand.u32 2147483647, %v446
    %vm479 = vcmp.eq.f32.partialorder %v478, 8.507059e+37
    %v480 = vand.u32 %v446, 2147483648
    %v481 = vor.u32 1.1754944e-38, %v480
    %v482 = vsel %vm479, %v481, %v477
    %v483 = vmul.f32 %v466, %v482
    %484 = vst.msk [vmem:[#allocation2 + $0x8] sm:$0xff] %vm121, %v483
    %485 = vrot.lane.b32.xlu0 %v416, 120
    %v486 = vpop.permute.xlu0 %485
    %487 = vrot.lane.b32.xlu0 %v416, 88
    %v488 = vpop.permute.xlu0 %487
    %v490 = vsel %vm121, %v486, 0
    %v493 = vsel %vm121, %v488, 0
    %495 = vmatpush.bf16.xpose.msra.mxu0 0
    %496 = vmatpush.bf16.xpose.msra.mxu0 0
    %497 = vmatpush.bf16.xpose.msra.mxu0 0
    %498 = vmatpush.bf16.xpose.msra.mxu0 0
    %499 = vmatpush.bf16.xpose.msra.mxu0 0
    %500 = vmatpush.bf16.xpose.msra.mxu0 0
    %501 = vmatpush.bf16.xpose.msra.mxu0 0
    %502 = vmatpush.bf16.xpose.msra.mxu0 %v493
    %503 = vmatmul.bf16.gmra.mxu0 %v490
    %v504 = vpop.f32.mrf.mxu0
    %v505 = vadd.f32 0.0, %v504
    %v506 = vpop.f32.mrf.mxu0
    %507 = vdwg.mxu0
    %v508 = vsel %vm121, %v505, -inf
    %509 = vmax.xlane.f32.xlu0 %v508
    %v510 = vpop.xlane.xlu0 %509
    %v511 = vsub.f32 %v505, %v510
    %v512 = vmul.f32 %v511, 1.442695
    %v513 = vpow.pop %v512
    %v514 = vsel %vm121, %v513, 0.0
    %515 = vadd.xlane.f32.xlu0 %v514
    %v516 = vpop.xlane.xlu0 %515
    %v517 = vpack.c.bf16 %v513, %v513
    %518 = vrot.lane.b32.xlu0 %v416, 56
    %v519 = vpop.permute.xlu0 %518
    %v521 = vsel %vm121, %v517, 0
    %v524 = vsel %vm156, %v519, 0
    %526 = vmatpush.bf16.msra.mxu0 0
    %527 = vmatpush.bf16.msra.mxu0 0
    %528 = vmatpush.bf16.msra.mxu0 0
    %529 = vmatpush.bf16.msra.mxu0 0
    %530 = vmatpush.bf16.msra.mxu0 0
    %531 = vmatpush.bf16.msra.mxu0 0
    %532 = vmatpush.bf16.msra.mxu0 0
    %533 = vmatpush.bf16.msra.mxu0 %v524
    %534 = vmatmul.bf16.gmra.mxu0 %v521
    %v535 = vpop.f32.mrf.mxu0
    %v536 = vadd.f32 0.0, %v535
    %v537 = vpop.f32.mrf.mxu0
    %538 = vdwg.mxu0
    %v539 = vrcp.pop %v516
    %v540 = vmul.f32 %v516, %v539
    %v541 = vsub.f32 1.0, %v540
    %v542 = vmul.f32 %v539, %v541
    %v543 = vadd.f32 %v539, %v542
    %vm544 = vweird.f32 %v516
    %vm545 = vweird.f32 %v539
    %vm546 = vmor %vm544, %vm545
    %v547 = vsel %vm546, %v539, %v543
    %v548 = vand.u32 2147483647, %v516
    %vm549 = vcmp.eq.f32.partialorder %v548, 8.507059e+37
    %v550 = vand.u32 %v516, 2147483648
    %v551 = vor.u32 1.1754944e-38, %v550
    %v552 = vsel %vm549, %v551, %v547
    %v553 = vmul.f32 %v536, %v552
    %555 = vrot.lane.b32.xlu0 %v553, 8
    %v556 = vpop.permute.xlu0 %555
    %558 = vst.msk [vmem:[#allocation2 + $0x8] sm:$0xff] %vm262, %v556
    %559 = vrot.lane.b32.xlu0 %v416, 112
    %v560 = vpop.permute.xlu0 %559
    %561 = vrot.lane.b32.xlu0 %v416, 80
    %v562 = vpop.permute.xlu0 %561
    %v564 = vsel %vm121, %v560, 0
    %v567 = vsel %vm121, %v562, 0
    %569 = vmatpush.bf16.xpose.msra.mxu0 0
    %570 = vmatpush.bf16.xpose.msra.mxu0 0
    %571 = vmatpush.bf16.xpose.msra.mxu0 0
    %572 = vmatpush.bf16.xpose.msra.mxu0 0
    %573 = vmatpush.bf16.xpose.msra.mxu0 0
    %574 = vmatpush.bf16.xpose.msra.mxu0 0
    %575 = vmatpush.bf16.xpose.msra.mxu0 0
    %576 = vmatpush.bf16.xpose.msra.mxu0 %v567
    %577 = vmatmul.bf16.gmra.mxu0 %v564
    %v578 = vpop.f32.mrf.mxu0
    %v579 = vadd.f32 0.0, %v578
    %v580 = vpop.f32.mrf.mxu0
    %581 = vdwg.mxu0
    %v582 = vsel %vm121, %v579, -inf
    %583 = vmax.xlane.f32.xlu0 %v582
    %v584 = vpop.xlane.xlu0 %583
    %v585 = vsub.f32 %v579, %v584
    %v586 = vmul.f32 %v585, 1.442695
    %v587 = vpow.pop %v586
    %v588 = vsel %vm121, %v587, 0.0
    %589 = vadd.xlane.f32.xlu0 %v588
    %v590 = vpop.xlane.xlu0 %589
    %v591 = vpack.c.bf16 %v587, %v587
    %592 = vrot.lane.b32.xlu0 %v416, 48
    %v593 = vpop.permute.xlu0 %592
    %v595 = vsel %vm121, %v591, 0
    %v598 = vsel %vm156, %v593, 0
    %600 = vmatpush.bf16.msra.mxu0 0
    %601 = vmatpush.bf16.msra.mxu0 0
    %602 = vmatpush.bf16.msra.mxu0 0
    %603 = vmatpush.bf16.msra.mxu0 0
    %604 = vmatpush.bf16.msra.mxu0 0
    %605 = vmatpush.bf16.msra.mxu0 0
    %606 = vmatpush.bf16.msra.mxu0 0
    %607 = vmatpush.bf16.msra.mxu0 %v598
    %608 = vmatmul.bf16.gmra.mxu0 %v595
    %v609 = vpop.f32.mrf.mxu0
    %v610 = vadd.f32 0.0, %v609
    %v611 = vpop.f32.mrf.mxu0
    %612 = vdwg.mxu0
    %v613 = vrcp.pop %v590
    %v614 = vmul.f32 %v590, %v613
    %v615 = vsub.f32 1.0, %v614
    %v616 = vmul.f32 %v613, %v615
    %v617 = vadd.f32 %v613, %v616
    %vm618 = vweird.f32 %v590
    %vm619 = vweird.f32 %v613
    %vm620 = vmor %vm618, %vm619
    %v621 = vsel %vm620, %v613, %v617
    %v622 = vand.u32 2147483647, %v590
    %vm623 = vcmp.eq.f32.partialorder %v622, 8.507059e+37
    %v624 = vand.u32 %v590, 2147483648
    %v625 = vor.u32 1.1754944e-38, %v624
    %v626 = vsel %vm623, %v625, %v621
    %v627 = vmul.f32 %v610, %v626
    %629 = vrot.lane.b32.xlu0 %v627, 16
    %v630 = vpop.permute.xlu0 %629
    %632 = vst.msk [vmem:[#allocation2 + $0x8] sm:$0xff] %vm337, %v630
    %633 = vrot.lane.b32.xlu0 %v416, 104
    %v634 = vpop.permute.xlu0 %633
    %635 = vrot.lane.b32.xlu0 %v416, 72
    %v636 = vpop.permute.xlu0 %635
    %v638 = vsel %vm121, %v634, 0
    %v641 = vsel %vm121, %v636, 0
    %643 = vmatpush.bf16.xpose.msra.mxu0 0
    %644 = vmatpush.bf16.xpose.msra.mxu0 0
    %645 = vmatpush.bf16.xpose.msra.mxu0 0
    %646 = vmatpush.bf16.xpose.msra.mxu0 0
    %647 = vmatpush.bf16.xpose.msra.mxu0 0
    %648 = vmatpush.bf16.xpose.msra.mxu0 0
    %649 = vmatpush.bf16.xpose.msra.mxu0 0
    %650 = vmatpush.bf16.xpose.msra.mxu0 %v641
    %651 = vmatmul.bf16.gmra.mxu0 %v638
    %v652 = vpop.f32.mrf.mxu0
    %v653 = vadd.f32 0.0, %v652
    %v654 = vpop.f32.mrf.mxu0
    %655 = vdwg.mxu0
    %v656 = vsel %vm121, %v653, -inf
    %657 = vmax.xlane.f32.xlu0 %v656
    %v658 = vpop.xlane.xlu0 %657
    %v659 = vsub.f32 %v653, %v658
    %v660 = vmul.f32 %v659, 1.442695
    %v661 = vpow.pop %v660
    %v662 = vsel %vm121, %v661, 0.0
    %663 = vadd.xlane.f32.xlu0 %v662
    %v664 = vpop.xlane.xlu0 %663
    %v665 = vpack.c.bf16 %v661, %v661
    %666 = vrot.lane.b32.xlu0 %v416, 40
    %v667 = vpop.permute.xlu0 %666
    %v669 = vsel %vm121, %v665, 0
    %v672 = vsel %vm156, %v667, 0
    %674 = vmatpush.bf16.msra.mxu0 0
    %675 = vmatpush.bf16.msra.mxu0 0
    %676 = vmatpush.bf16.msra.mxu0 0
    %677 = vmatpush.bf16.msra.mxu0 0
    %678 = vmatpush.bf16.msra.mxu0 0
    %679 = vmatpush.bf16.msra.mxu0 0
    %680 = vmatpush.bf16.msra.mxu0 0
    %681 = vmatpush.bf16.msra.mxu0 %v672
    %682 = vmatmul.bf16.gmra.mxu0 %v669
    %v683 = vpop.f32.mrf.mxu0
    %v684 = vadd.f32 0.0, %v683
    %v685 = vpop.f32.mrf.mxu0
    %686 = vdwg.mxu0
    %v687 = vrcp.pop %v664
    %v688 = vmul.f32 %v664, %v687
    %v689 = vsub.f32 1.0, %v688
    %v690 = vmul.f32 %v687, %v689
    %v691 = vadd.f32 %v687, %v690
    %vm692 = vweird.f32 %v664
    %vm693 = vweird.f32 %v687
    %vm694 = vmor %vm692, %vm693
    %v695 = vsel %vm694, %v687, %v691
    %v696 = vand.u32 2147483647, %v664
    %vm697 = vcmp.eq.f32.partialorder %v696, 8.507059e+37
    %v698 = vand.u32 %v664, 2147483648
    %v699 = vor.u32 1.1754944e-38, %v698
    %v700 = vsel %vm697, %v699, %v695
    %v701 = vmul.f32 %v684, %v700
    %703 = vrot.lane.b32.xlu0 %v701, 24
    %v704 = vpop.permute.xlu0 %703
    %706 = vst.msk [vmem:[#allocation2 + $0x8] sm:$0xff] %vm412, %v704
    %v707 = vld [vmem:[#allocation2] sm:$0xff]
    %v708 = vld [vmem:[#allocation2 + $0x8] sm:$0xff]
    %v709 = vpack.c.bf16 %v708, %v707
    %v710 = vld [vmem:[#allocation8] sm:$0xf]
    %v711 = vld [vmem:[#allocation8 + $0x4] sm:$0xf]
    %v712 = vld [vmem:[#allocation8 + $0x8] sm:$0xf]
    %v713 = vld [vmem:[#allocation8 + $0xc] sm:$0xf]
    %v714 = vld [vmem:[%s4] sm:$0x1]
    %v716 = vperm.slane %v714, 0
    %v722 = vunpack.c.l.b16 %v710
    %v723 = vunpack.c.l.b16 %v711
    %v724 = vunpack.c.l.b16 %v712
    %v725 = vunpack.c.l.b16 %v713
    %v726 = vpack.c.b16 %v723, %v722
    %v727 = vpack.c.b16 %v725, %v724
    %v731 = vsel %vm96, %v709, 0
    %733 = vmatpush.bf16.msra.mxu0 0
    %734 = vmatpush.bf16.msra.mxu0 0
    %735 = vmatpush.bf16.msra.mxu0 0
    %736 = vmatpush.bf16.msra.mxu0 0
    %737 = vmatpush.bf16.msra.mxu0 0
    %738 = vmatpush.bf16.msra.mxu0 0
    %739 = vmatpush.bf16.msra.mxu0 %v727
    %740 = vmatpush.bf16.msra.mxu0 %v726
    %741 = vmatmul.bf16.gmra.mxu0 %v731
    %v742 = vpop.f32.mrf.mxu0
    %v743 = vadd.f32 %v716, %v742
    %v744 = vpop.f32.mrf.mxu0
    %v745 = vadd.f32 %v716, %v744
    %746 = vdwg.mxu0
    %747 = vst.msk [vmem:[#allocation9] sm:$0xff] %vm96, %v743
    %748 = vst.msk [vmem:[#allocation9 + $0x8] sm:$0xff] %vm96, %v745
    // Predicated region
    $region34: #{tpu_custom_call.1} parent=1 // pred_check
      _
    $region35: #{tpu_custom_call.1} parent=1 // pred_check_branch
      %750 = sbr.rel (0) target = $region37
    $region36: #{tpu_custom_call.1} parent=1 // pred_region
      %752 = vsyncadd [#allocation5], 0
      %s753 = sshll.u32 [#allocation9], 4
      %s754 = int_to_ptr.vmem [resolvable:$true] %s753
      %s755 = sshll.u32 %s5, 4
      %s756 = int_to_ptr.hbm [resolvable:$true] %s755
      %761 = dma.vmem_to_hbm [thread:$0]  %s754, 256, %s756, [#allocation5], 128, 128, 8
    $region37: #{tpu_custom_call.1} parent=1 // pred_fallthru
      _
    // Predicated region
    $region38: #{tpu_custom_call.1} parent=1 // pred_check
      _
    $region39: #{tpu_custom_call.1} parent=1 // pred_check_branch
      %763 = sbr.rel (0) target = $region41
    $region40: #{tpu_custom_call.1} parent=1 // pred_region
      %765 = dma.done [#allocation5], 256
    $region41: #{tpu_custom_call.1} parent=1 // pred_fallthru
      _
    %766 = vsyncpa [#allocation4], 1
    %767 = vsyncpa [#allocation7], 1
    %768 = vsyncpa [#allocation5], 1

// kernel: tpu_custom_call.1
$region0: #{tpu_custom_call.1}
  #allocation0 [shape = 'u32[]', space=smem, size = 0x4, offset = 0x4, fixed_abs, tag = 'smem constant byte address 0x4 - core index']
  #allocation1 [shape = 'u32[72,128]{1,0:T(1,128)}', space=vmem, size = 0x9000, scoped, tag = 'internal scratch']
  #allocation2 [shape = 'f32[16,32]{1,0:T(8,128)}', space=vmem, size = 0x2000, scoped, tag = 'scratch operand']
  %s0 = inlined_call_operand.hbm [shape: bf16[16,32], index: 0, kind: input, shape index: {}]
  %s1 = inlined_call_operand.hbm [shape: bf16[32,96], index: 1, kind: input, shape index: {}]
  %s2 = inlined_call_operand.vmem [shape: f32[1,96], index: 2, kind: input, shape index: {}]
  %s3 = inlined_call_operand.hbm [shape: bf16[32,32], index: 3, kind: input, shape index: {}]
  %s4 = inlined_call_operand.vmem [shape: f32[1,32], index: 4, kind: input, shape index: {}]
  %s5 = inlined_call_operand.hbm [shape: f32[16,32], index: 5, kind: output, shape index: {}]
  %s6 = sld [smem:[#allocation0]]
  $region42: #{tpu_custom_call.1} parent=0
    _
  %s8 = ssub.s32 1, %s6
  %s9 = scalar_select 0, %s8, %s6
  $region1: #{tpu_custom_call.1} parent=0
    #allocation3 [shape = 'u8[4096]{0}', space=vmem, size = 0x1000, scoped, tag = 'input window, operand 0, single buffered']
    #allocation4 [shape = 's32[1]{0}', space=sflag, size = 0x4, scoped, tag = 'scoped memory for tpu_custom_call.1']
    #allocation5 [shape = 's32[1]{0}', space=sflag, size = 0x4, scoped, tag = 'scoped memory for tpu_custom_call.1']
    #allocation6 [shape = 'u8[8192]{0}', space=vmem, size = 0x2000, scoped, tag = 'input window, operand 1, single buffered']
    #allocation7 [shape = 's32[1]{0}', space=sflag, size = 0x4, scoped, tag = 'scoped memory for tpu_custom_call.1']
    #allocation8 [shape = 'u8[8192]{0}', space=vmem, size = 0x2000, scoped, tag = 'input window, operand 3, single buffered']
    #allocation9 [shape = 'u8[8192]{0}', space=vmem, size = 0x2000, scoped, tag = 'output window, operand 0, single buffered']
    %10 = vsyncpa [#allocation4], 0
    %11 = vsyncpa [#allocation7], 0
    %12 = vsyncpa [#allocation5], 0
    // Predicated region
    $region2: #{tpu_custom_call.1} parent=1 // pred_check
      _
    $region3: #{tpu_custom_call.1} parent=1 // pred_check_branch
      %14 = sbr.rel (0) target = $region5
    $region4: #{tpu_custom_call.1} parent=1 // pred_region
      %16 = vsyncadd [#allocation4], 0
      %s17 = sshll.u32 %s0, 4
      %s18 = int_to_ptr.hbm [resolvable:$true] %s17
      %s19 = sshll.u32 [#allocation3], 4
      %s20 = int_to_ptr.vmem [resolvable:$true] %s19
      %25 = dma.hbm_to_vmem [thread:$0]  %s18, 128, %s20, [#allocation4], 64, 64, 4
    $region5: #{tpu_custom_call.1} parent=1 // pred_fallthru
      _
    // Predicated region
    $region6: #{tpu_custom_call.1} parent=1 // pred_check
      _
    $region7: #{tpu_custom_call.1} parent=1 // pred_check_branch
      %27 = sbr.rel (0) target = $region9
    $region8: #{tpu_custom_call.1} parent=1 // pred_region
      %29 = vsyncadd [#allocation7], 0
      %s30 = sshll.u32 %s1, 4
      %s31 = int_to_ptr.hbm [resolvable:$true] %s30
      %s32 = sshll.u32 [#allocation6], 4
      %s33 = int_to_ptr.vmem [resolvable:$true] %s32
      %38 = dma.hbm_to_vmem [thread:$0]  %s31, 256, %s33, [#allocation7], 64, 64, 4
    $region9: #{tpu_custom_call.1} parent=1 // pred_fallthru
      _
    // Predicated region
    $region10: #{tpu_custom_call.1} parent=1 // pred_check
      _
    $region11: #{tpu_custom_call.1} parent=1 // pred_check_branch
      %40 = sbr.rel (0) target = $region13
    $region12: #{tpu_custom_call.1} parent=1 // pred_region
      _
    $region13: #{tpu_custom_call.1} parent=1 // pred_fallthru
      _
    // Predicated region
    $region14: #{tpu_custom_call.1} parent=1 // pred_check
      _
    $region15: #{tpu_custom_call.1} parent=1 // pred_check_branch
      %42 = sbr.rel (0) target = $region17
    $region16: #{tpu_custom_call.1} parent=1 // pred_region
      %44 = vsyncadd [#allocation7], 0
      %s45 = sshll.u32 %s3, 4
      %s46 = int_to_ptr.hbm [resolvable:$true] %s45
      %s47 = sshll.u32 [#allocation8], 4
      %s48 = int_to_ptr.vmem [resolvable:$true] %s47
      %53 = dma.hbm_to_vmem [thread:$0]  %s46, 256, %s48, [#allocation7], 64, 64, 4
    $region17: #{tpu_custom_call.1} parent=1 // pred_fallthru
      _
    // Predicated region
    $region18: #{tpu_custom_call.1} parent=1 // pred_check
      _
    $region19: #{tpu_custom_call.1} parent=1 // pred_check_branch
      %55 = sbr.rel (0) target = $region21
    $region20: #{tpu_custom_call.1} parent=1 // pred_region
      _
    $region21: #{tpu_custom_call.1} parent=1 // pred_fallthru
      _
    // Predicated region
    $region22: #{tpu_custom_call.1} parent=1 // pred_check
      _
    $region23: #{tpu_custom_call.1} parent=1 // pred_check_branch
      %57 = sbr.rel (0) target = $region25
    $region24: #{tpu_custom_call.1} parent=1 // pred_region
      %59 = dma.done [#allocation4], 128
    $region25: #{tpu_custom_call.1} parent=1 // pred_fallthru
      _
    // Predicated region
    $region26: #{tpu_custom_call.1} parent=1 // pred_check
      _
    $region27: #{tpu_custom_call.1} parent=1 // pred_check_branch
      %61 = sbr.rel (0) target = $region29
    $region28: #{tpu_custom_call.1} parent=1 // pred_region
      %63 = dma.done [#allocation7], 256
    $region29: #{tpu_custom_call.1} parent=1 // pred_fallthru
      _
    // Predicated region
    $region30: #{tpu_custom_call.1} parent=1 // pred_check
      _
    $region31: #{tpu_custom_call.1} parent=1 // pred_check_branch
      %65 = sbr.rel (0) target = $region33
    $region32: #{tpu_custom_call.1} parent=1 // pred_region
      %67 = dma.done [#allocation7], 256
    $region33: #{tpu_custom_call.1} parent=1 // pred_fallthru
      _
    %v69 = vld [vmem:[#allocation3] sm:$0xf]
    %v70 = vld [vmem:[#allocation3 + $0x4] sm:$0xf]
    %v71 = vld [vmem:[#allocation6] sm:$0xf]
    %v72 = vld [vmem:[#allocation6 + $0x4] sm:$0xf]
    %v73 = vld [vmem:[#allocation6 + $0x8] sm:$0xf]
    %v74 = vld [vmem:[#allocation6 + $0xc] sm:$0xf]
    %v75 = vld [vmem:[%s2] sm:$0x1]
    %v77 = vperm.slane %v75, 0
    %v81 = vunpack.c.l.b16 %v69
    %v82 = vunpack.c.l.b16 %v70
    %v83 = vpack.c.b16 %v82, %v81
    %v88 = vunpack.c.l.b16 %v71
    %v89 = vunpack.c.l.b16 %v72
    %v90 = vunpack.c.l.b16 %v73
    %v91 = vunpack.c.l.b16 %v74
    %v92 = vpack.c.b16 %v89, %v88
    %v93 = vpack.c.b16 %v91, %v90
    %vm96 = vcmask 261120
    %v98 = vsel %vm96, %v83, 0
    %100 = vmatpush.bf16.msra.mxu0 0
    %101 = vmatpush.bf16.msra.mxu0 0
    %102 = vmatpush.bf16.msra.mxu0 0
    %103 = vmatpush.bf16.msra.mxu0 0
    %104 = vmatpush.bf16.msra.mxu0 0
    %105 = vmatpush.bf16.msra.mxu0 0
    %106 = vmatpush.bf16.msra.mxu0 %v93
    %107 = vmatpush.bf16.msra.mxu0 %v92
    %108 = vmatmul.bf16.gmra.mxu0 %v98
    %v109 = vpop.f32.mrf.mxu0
    %v110 = vadd.f32 %v77, %v109
    %v111 = vpop.f32.mrf.mxu0
    %v112 = vadd.f32 %v77, %v111
    %113 = vdwg.mxu0
    %v114 = vpack.c.bf16 %v110, %v110
    %v115 = vpack.c.bf16 %v112, %v112
    %v117 = vunpack.c.l.b16 %v114
    %v118 = vpack.c.b16 %v117, %v117
    %119 = vrot.lane.b32.xlu0 %v118, 96
    %v120 = vpop.permute.xlu0 %119
    %vm121 = vcmask 64512
    %v123 = vsel %vm121, %v114, 0
    %v126 = vsel %vm121, %v120, 0
    %128 = vmatpush.bf16.xpose.msra.mxu0 0
    %129 = vmatpush.bf16.xpose.msra.mxu0 0
    %130 = vmatpush.bf16.xpose.msra.mxu0 0
    %131 = vmatpush.bf16.xpose.msra.mxu0 0
    %132 = vmatpush.bf16.xpose.msra.mxu0 0
    %133 = vmatpush.bf16.xpose.msra.mxu0 0
    %134 = vmatpush.bf16.xpose.msra.mxu0 0
    %135 = vmatpush.bf16.xpose.msra.mxu0 %v126
    %136 = vmatmul.bf16.gmra.mxu0 %v123
    %v137 = vpop.f32.mrf.mxu0
    %v138 = vadd.f32 0.0, %v137
    %v139 = vpop.f32.mrf.mxu0
    %140 = vdwg.mxu0
    %v141 = vsel %vm121, %v138, -inf
    %142 = vmax.xlane.f32.xlu0 %v141
    %v143 = vpop.xlane.xlu0 %142
    %v144 = vsub.f32 %v138, %v143
    %v145 = vmul.f32 %v144, 1.442695
    %v146 = vpow.pop %v145
    %v147 = vsel %vm121, %v146, 0.0
    %148 = vadd.xlane.f32.xlu0 %v147
    %v149 = vpop.xlane.xlu0 %148
    %v150 = vpack.c.bf16 %v146, %v146
    %151 = vrot.lane.b32.xlu0 %v118, 64
    %v152 = vpop.permute.xlu0 %151
    %v154 = vsel %vm121, %v150, 0
    %vm156 = vcmask 1043456
    %v158 = vsel %vm156, %v152, 0
    %160 = vmatpush.bf16.msra.mxu0 0
    %161 = vmatpush.bf16.msra.mxu0 0
    %162 = vmatpush.bf16.msra.mxu0 0
    %163 = vmatpush.bf16.msra.mxu0 0
    %164 = vmatpush.bf16.msra.mxu0 0
    %165 = vmatpush.bf16.msra.mxu0 0
    %166 = vmatpush.bf16.msra.mxu0 0
    %167 = vmatpush.bf16.msra.mxu0 %v158
    %168 = vmatmul.bf16.gmra.mxu0 %v154
    %v169 = vpop.f32.mrf.mxu0
    %v170 = vadd.f32 0.0, %v169
    %v171 = vpop.f32.mrf.mxu0
    %172 = vdwg.mxu0
    %v173 = vrcp.pop %v149
    %v174 = vmul.f32 %v149, %v173
    %v175 = vsub.f32 1.0, %v174
    %v176 = vmul.f32 %v173, %v175
    %v177 = vadd.f32 %v173, %v176
    %vm178 = vweird.f32 %v149
    %vm179 = vweird.f32 %v173
    %vm180 = vmor %vm178, %vm179
    %v181 = vsel %vm180, %v173, %v177
    %v182 = vand.u32 2147483647, %v149
    %vm183 = vcmp.eq.f32.partialorder %v182, 8.507059e+37
    %v184 = vand.u32 %v149, 2147483648
    %v185 = vor.u32 1.1754944e-38, %v184
    %v186 = vsel %vm183, %v185, %v181
    %v187 = vmul.f32 %v170, %v186
    %188 = vst.msk [vmem:[#allocation2] sm:$0xff] %vm121, %v187
    %189 = vrot.lane.b32.xlu0 %v118, 120
    %v190 = vpop.permute.xlu0 %189
    %191 = vrot.lane.b32.xlu0 %v118, 88
    %v192 = vpop.permute.xlu0 %191
    %v194 = vsel %vm121, %v190, 0
    %v197 = vsel %vm121, %v192, 0
    %199 = vmatpush.bf16.xpose.msra.mxu0 0
    %200 = vmatpush.bf16.xpose.msra.mxu0 0
    %201 = vmatpush.bf16.xpose.msra.mxu0 0
    %202 = vmatpush.bf16.xpose.msra.mxu0 0
    %203 = vmatpush.bf16.xpose.msra.mxu0 0
    %204 = vmatpush.bf16.xpose.msra.mxu0 0
    %205 = vmatpush.bf16.xpose.msra.mxu0 0
    %206 = vmatpush.bf16.xpose.msra.mxu0 %v197
    %207 = vmatmul.bf16.gmra.mxu0 %v194
    %v208 = vpop.f32.mrf.mxu0
    %v209 = vadd.f32 0.0, %v208
    %v210 = vpop.f32.mrf.mxu0
    %211 = vdwg.mxu0
    %v212 = vsel %vm121, %v209, -inf
    %213 = vmax.xlane.f32.xlu0 %v212
    %v214 = vpop.xlane.xlu0 %213
    %v215 = vsub.f32 %v209, %v214
    %v216 = vmul.f32 %v215, 1.442695
    %v217 = vpow.pop %v216
    %v218 = vsel %vm121, %v217, 0.0
    %219 = vadd.xlane.f32.xlu0 %v218
    %v220 = vpop.xlane.xlu0 %219
    %v221 = vpack.c.bf16 %v217, %v217
    %222 = vrot.lane.b32.xlu0 %v118, 56
    %v223 = vpop.permute.xlu0 %222
    %v225 = vsel %vm121, %v221, 0
    %v228 = vsel %vm156, %v223, 0
    %230 = vmatpush.bf16.msra.mxu0 0
    %231 = vmatpush.bf16.msra.mxu0 0
    %232 = vmatpush.bf16.msra.mxu0 0
    %233 = vmatpush.bf16.msra.mxu0 0
    %234 = vmatpush.bf16.msra.mxu0 0
    %235 = vmatpush.bf16.msra.mxu0 0
    %236 = vmatpush.bf16.msra.mxu0 0
    %237 = vmatpush.bf16.msra.mxu0 %v228
    %238 = vmatmul.bf16.gmra.mxu0 %v225
    %v239 = vpop.f32.mrf.mxu0
    %v240 = vadd.f32 0.0, %v239
    %v241 = vpop.f32.mrf.mxu0
    %242 = vdwg.mxu0
    %v243 = vrcp.pop %v220
    %v244 = vmul.f32 %v220, %v243
    %v245 = vsub.f32 1.0, %v244
    %v246 = vmul.f32 %v243, %v245
    %v247 = vadd.f32 %v243, %v246
    %vm248 = vweird.f32 %v220
    %vm249 = vweird.f32 %v243
    %vm250 = vmor %vm248, %vm249
    %v251 = vsel %vm250, %v243, %v247
    %v252 = vand.u32 2147483647, %v220
    %vm253 = vcmp.eq.f32.partialorder %v252, 8.507059e+37
    %v254 = vand.u32 %v220, 2147483648
    %v255 = vor.u32 1.1754944e-38, %v254
    %v256 = vsel %vm253, %v255, %v251
    %v257 = vmul.f32 %v240, %v256
    %259 = vrot.lane.b32.xlu0 %v257, 8
    %v260 = vpop.permute.xlu0 %259
    %vm262 = vcmask 130112
    %263 = vst.msk [vmem:[#allocation2] sm:$0xff] %vm262, %v260
    %264 = vrot.lane.b32.xlu0 %v118, 112
    %v265 = vpop.permute.xlu0 %264
    %266 = vrot.lane.b32.xlu0 %v118, 80
    %v267 = vpop.permute.xlu0 %266
    %v269 = vsel %vm121, %v265, 0
    %v272 = vsel %vm121, %v267, 0
    %274 = vmatpush.bf16.xpose.msra.mxu0 0
    %275 = vmatpush.bf16.xpose.msra.mxu0 0
    %276 = vmatpush.bf16.xpose.msra.mxu0 0
    %277 = vmatpush.bf16.xpose.msra.mxu0 0
    %278 = vmatpush.bf16.xpose.msra.mxu0 0
    %279 = vmatpush.bf16.xpose.msra.mxu0 0
    %280 = vmatpush.bf16.xpose.msra.mxu0 0
    %281 = vmatpush.bf16.xpose.msra.mxu0 %v272
    %282 = vmatmul.bf16.gmra.mxu0 %v269
    %v283 = vpop.f32.mrf.mxu0
    %v284 = vadd.f32 0.0, %v283
    %v285 = vpop.f32.mrf.mxu0
    %286 = vdwg.mxu0
    %v287 = vsel %vm121, %v284, -inf
    %288 = vmax.xlane.f32.xlu0 %v287
    %v289 = vpop.xlane.xlu0 %288
    %v290 = vsub.f32 %v284, %v289
    %v291 = vmul.f32 %v290, 1.442695
    %v292 = vpow.pop %v291
    %v293 = vsel %vm121, %v292, 0.0
    %294 = vadd.xlane.f32.xlu0 %v293
    %v295 = vpop.xlane.xlu0 %294
    %v296 = vpack.c.bf16 %v292, %v292
    %297 = vrot.lane.b32.xlu0 %v118, 48
    %v298 = vpop.permute.xlu0 %297
    %v300 = vsel %vm121, %v296, 0
    %v303 = vsel %vm156, %v298, 0
    %305 = vmatpush.bf16.msra.mxu0 0
    %306 = vmatpush.bf16.msra.mxu0 0
    %307 = vmatpush.bf16.msra.mxu0 0
    %308 = vmatpush.bf16.msra.mxu0 0
    %309 = vmatpush.bf16.msra.mxu0 0
    %310 = vmatpush.bf16.msra.mxu0 0
    %311 = vmatpush.bf16.msra.mxu0 0
    %312 = vmatpush.bf16.msra.mxu0 %v303
    %313 = vmatmul.bf16.gmra.mxu0 %v300
    %v314 = vpop.f32.mrf.mxu0
    %v315 = vadd.f32 0.0, %v314
    %v316 = vpop.f32.mrf.mxu0
    %317 = vdwg.mxu0
    %v318 = vrcp.pop %v295
    %v319 = vmul.f32 %v295, %v318
    %v320 = vsub.f32 1.0, %v319
    %v321 = vmul.f32 %v318, %v320
    %v322 = vadd.f32 %v318, %v321
    %vm323 = vweird.f32 %v295
    %vm324 = vweird.f32 %v318
    %vm325 = vmor %vm323, %vm324
    %v326 = vsel %vm325, %v318, %v322
    %v327 = vand.u32 2147483647, %v295
    %vm328 = vcmp.eq.f32.partialorder %v327, 8.507059e+37
    %v329 = vand.u32 %v295, 2147483648
    %v330 = vor.u32 1.1754944e-38, %v329
    %v331 = vsel %vm328, %v330, %v326
    %v332 = vmul.f32 %v315, %v331
    %334 = vrot.lane.b32.xlu0 %v332, 16
    %v335 = vpop.permute.xlu0 %334
    %vm337 = vcmask 195712
    %338 = vst.msk [vmem:[#allocation2] sm:$0xff] %vm337, %v335
    %339 = vrot.lane.b32.xlu0 %v118, 104
    %v340 = vpop.permute.xlu0 %339
    %341 = vrot.lane.b32.xlu0 %v118, 72
    %v342 = vpop.permute.xlu0 %341
    %v344 = vsel %vm121, %v340, 0
    %v347 = vsel %vm121, %v342, 0
    %349 = vmatpush.bf16.xpose.msra.mxu0 0
    %350 = vmatpush.bf16.xpose.msra.mxu0 0
    %351 = vmatpush.bf16.xpose.msra.mxu0 0
    %352 = vmatpush.bf16.xpose.msra.mxu0 0
    %353 = vmatpush.bf16.xpose.msra.mxu0 0
    %354 = vmatpush.bf16.xpose.msra.mxu0 0
    %355 = vmatpush.bf16.xpose.msra.mxu0 0
    %356 = vmatpush.bf16.xpose.msra.mxu0 %v347
    %357 = vmatmul.bf16.gmra.mxu0 %v344
    %v358 = vpop.f32.mrf.mxu0
    %v359 = vadd.f32 0.0, %v358
    %v360 = vpop.f32.mrf.mxu0
    %361 = vdwg.mxu0
    %v362 = vsel %vm121, %v359, -inf
    %363 = vmax.xlane.f32.xlu0 %v362
    %v364 = vpop.xlane.xlu0 %363
    %v365 = vsub.f32 %v359, %v364
    %v366 = vmul.f32 %v365, 1.442695
    %v367 = vpow.pop %v366
    %v368 = vsel %vm121, %v367, 0.0
    %369 = vadd.xlane.f32.xlu0 %v368
    %v370 = vpop.xlane.xlu0 %369
    %v371 = vpack.c.bf16 %v367, %v367
    %372 = vrot.lane.b32.xlu0 %v118, 40
    %v373 = vpop.permute.xlu0 %372
    %v375 = vsel %vm121, %v371, 0
    %v378 = vsel %vm156, %v373, 0
    %380 = vmatpush.bf16.msra.mxu0 0
    %381 = vmatpush.bf16.msra.mxu0 0
    %382 = vmatpush.bf16.msra.mxu0 0
    %383 = vmatpush.bf16.msra.mxu0 0
    %384 = vmatpush.bf16.msra.mxu0 0
    %385 = vmatpush.bf16.msra.mxu0 0
    %386 = vmatpush.bf16.msra.mxu0 0
    %387 = vmatpush.bf16.msra.mxu0 %v378
    %388 = vmatmul.bf16.gmra.mxu0 %v375
    %v389 = vpop.f32.mrf.mxu0
    %v390 = vadd.f32 0.0, %v389
    %v391 = vpop.f32.mrf.mxu0
    %392 = vdwg.mxu0
    %v393 = vrcp.pop %v370
    %v394 = vmul.f32 %v370, %v393
    %v395 = vsub.f32 1.0, %v394
    %v396 = vmul.f32 %v393, %v395
    %v397 = vadd.f32 %v393, %v396
    %vm398 = vweird.f32 %v370
    %vm399 = vweird.f32 %v393
    %vm400 = vmor %vm398, %vm399
    %v401 = vsel %vm400, %v393, %v397
    %v402 = vand.u32 2147483647, %v370
    %vm403 = vcmp.eq.f32.partialorder %v402, 8.507059e+37
    %v404 = vand.u32 %v370, 2147483648
    %v405 = vor.u32 1.1754944e-38, %v404
    %v406 = vsel %vm403, %v405, %v401
    %v407 = vmul.f32 %v390, %v406
    %409 = vrot.lane.b32.xlu0 %v407, 24
    %v410 = vpop.permute.xlu0 %409
    %vm412 = vcmask 261312
    %413 = vst.msk [vmem:[#allocation2] sm:$0xff] %vm412, %v410
    %v415 = vunpack.c.l.b16 %v115
    %v416 = vpack.c.b16 %v415, %v415
    %417 = vrot.lane.b32.xlu0 %v416, 96
    %v418 = vpop.permute.xlu0 %417
    %v420 = vsel %vm121, %v115, 0
    %v423 = vsel %vm121, %v418, 0
    %425 = vmatpush.bf16.xpose.msra.mxu0 0
    %426 = vmatpush.bf16.xpose.msra.mxu0 0
    %427 = vmatpush.bf16.xpose.msra.mxu0 0
    %428 = vmatpush.bf16.xpose.msra.mxu0 0
    %429 = vmatpush.bf16.xpose.msra.mxu0 0
    %430 = vmatpush.bf16.xpose.msra.mxu0 0
    %431 = vmatpush.bf16.xpose.msra.mxu0 0
    %432 = vmatpush.bf16.xpose.msra.mxu0 %v423
    %433 = vmatmul.bf16.gmra.mxu0 %v420
    %v434 = vpop.f32.mrf.mxu0
    %v435 = vadd.f32 0.0, %v434
    %v436 = vpop.f32.mrf.mxu0
    %437 = vdwg.mxu0
    %v438 = vsel %vm121, %v435, -inf
    %439 = vmax.xlane.f32.xlu0 %v438
    %v440 = vpop.xlane.xlu0 %439
    %v441 = vsub.f32 %v435, %v440
    %v442 = vmul.f32 %v441, 1.442695
    %v443 = vpow.pop %v442
    %v444 = vsel %vm121, %v443, 0.0
    %445 = vadd.xlane.f32.xlu0 %v444
    %v446 = vpop.xlane.xlu0 %445
    %v447 = vpack.c.bf16 %v443, %v443
    %448 = vrot.lane.b32.xlu0 %v416, 64
    %v449 = vpop.permute.xlu0 %448
    %v451 = vsel %vm121, %v447, 0
    %v454 = vsel %vm156, %v449, 0
    %456 = vmatpush.bf16.msra.mxu0 0
    %457 = vmatpush.bf16.msra.mxu0 0
    %458 = vmatpush.bf16.msra.mxu0 0
    %459 = vmatpush.bf16.msra.mxu0 0
    %460 = vmatpush.bf16.msra.mxu0 0
    %461 = vmatpush.bf16.msra.mxu0 0
    %462 = vmatpush.bf16.msra.mxu0 0
    %463 = vmatpush.bf16.msra.mxu0 %v454
    %464 = vmatmul.bf16.gmra.mxu0 %v451
    %v465 = vpop.f32.mrf.mxu0
    %v466 = vadd.f32 0.0, %v465
    %v467 = vpop.f32.mrf.mxu0
    %468 = vdwg.mxu0
    %v469 = vrcp.pop %v446
    %v470 = vmul.f32 %v446, %v469
    %v471 = vsub.f32 1.0, %v470
    %v472 = vmul.f32 %v469, %v471
    %v473 = vadd.f32 %v469, %v472
    %vm474 = vweird.f32 %v446
    %vm475 = vweird.f32 %v469
    %vm476 = vmor %vm474, %vm475
    %v477 = vsel %vm476, %v469, %v473
    %v478 = vand.u32 2147483647, %v446
    %vm479 = vcmp.eq.f32.partialorder %v478, 8.507059e+37
    %v480 = vand.u32 %v446, 2147483648
    %v481 = vor.u32 1.1754944e-38, %v480
    %v482 = vsel %vm479, %v481, %v477
    %v483 = vmul.f32 %v466, %v482
    %484 = vst.msk [vmem:[#allocation2 + $0x8] sm:$0xff] %vm121, %v483
    %485 = vrot.lane.b32.xlu0 %v416, 120
    %v486 = vpop.permute.xlu0 %485
    %487 = vrot.lane.b32.xlu0 %v416, 88
    %v488 = vpop.permute.xlu0 %487
    %v490 = vsel %vm121, %v486, 0
    %v493 = vsel %vm121, %v488, 0
    %495 = vmatpush.bf16.xpose.msra.mxu0 0
    %496 = vmatpush.bf16.xpose.msra.mxu0 0
    %497 = vmatpush.bf16.xpose.msra.mxu0 0
    %498 = vmatpush.bf16.xpose.msra.mxu0 0
    %499 = vmatpush.bf16.xpose.msra.mxu0 0
    %500 = vmatpush.bf16.xpose.msra.mxu0 0
    %501 = vmatpush.bf16.xpose.msra.mxu0 0
    %502 = vmatpush.bf16.xpose.msra.mxu0 %v493
    %503 = vmatmul.bf16.gmra.mxu0 %v490
    %v504 = vpop.f32.mrf.mxu0
    %v505 = vadd.f32 0.0, %v504
    %v506 = vpop.f32.mrf.mxu0
    %507 = vdwg.mxu0
    %v508 = vsel %vm121, %v505, -inf
    %509 = vmax.xlane.f32.xlu0 %v508
    %v510 = vpop.xlane.xlu0 %509
    %v511 = vsub.f32 %v505, %v510
    %v512 = vmul.f32 %v511, 1.442695
    %v513 = vpow.pop %v512
    %v514 = vsel %vm121, %v513, 0.0
    %515 = vadd.xlane.f32.xlu0 %v514
    %v516 = vpop.xlane.xlu0 %515
    %v517 = vpack.c.bf16 %v513, %v513
    %518 = vrot.lane.b32.xlu0 %v416, 56
    %v519 = vpop.permute.xlu0 %518
    %v521 = vsel %vm121, %v517, 0
    %v524 = vsel %vm156, %v519, 0
    %526 = vmatpush.bf16.msra.mxu0 0
    %527 = vmatpush.bf16.msra.mxu0 0
    %528 = vmatpush.bf16.msra.mxu0 0
    %529 = vmatpush.bf16.msra.mxu0 0
    %530 = vmatpush.bf16.msra.mxu0 0
    %531 = vmatpush.bf16.msra.mxu0 0
    %532 = vmatpush.bf16.msra.mxu0 0
    %533 = vmatpush.bf16.msra.mxu0 %v524
    %534 = vmatmul.bf16.gmra.mxu0 %v521
    %v535 = vpop.f32.mrf.mxu0
    %v536 = vadd.f32 0.0, %v535
    %v537 = vpop.f32.mrf.mxu0
    %538 = vdwg.mxu0
    %v539 = vrcp.pop %v516
    %v540 = vmul.f32 %v516, %v539
    %v541 = vsub.f32 1.0, %v540
    %v542 = vmul.f32 %v539, %v541
    %v543 = vadd.f32 %v539, %v542
    %vm544 = vweird.f32 %v516
    %vm545 = vweird.f32 %v539
    %vm546 = vmor %vm544, %vm545
    %v547 = vsel %vm546, %v539, %v543
    %v548 = vand.u32 2147483647, %v516
    %vm549 = vcmp.eq.f32.partialorder %v548, 8.507059e+37
    %v550 = vand.u32 %v516, 2147483648
    %v551 = vor.u32 1.1754944e-38, %v550
    %v552 = vsel %vm549, %v551, %v547
    %v553 = vmul.f32 %v536, %v552
    %555 = vrot.lane.b32.xlu0 %v553, 8
    %v556 = vpop.permute.xlu0 %555
    %558 = vst.msk [vmem:[#allocation2 + $0x8] sm:$0xff] %vm262, %v556
    %559 = vrot.lane.b32.xlu0 %v416, 112
    %v560 = vpop.permute.xlu0 %559
    %561 = vrot.lane.b32.xlu0 %v416, 80
    %v562 = vpop.permute.xlu0 %561
    %v564 = vsel %vm121, %v560, 0
    %v567 = vsel %vm121, %v562, 0
    %569 = vmatpush.bf16.xpose.msra.mxu0 0
    %570 = vmatpush.bf16.xpose.msra.mxu0 0
    %571 = vmatpush.bf16.xpose.msra.mxu0 0
    %572 = vmatpush.bf16.xpose.msra.mxu0 0
    %573 = vmatpush.bf16.xpose.msra.mxu0 0
    %574 = vmatpush.bf16.xpose.msra.mxu0 0
    %575 = vmatpush.bf16.xpose.msra.mxu0 0
    %576 = vmatpush.bf16.xpose.msra.mxu0 %v567
    %577 = vmatmul.bf16.gmra.mxu0 %v564
    %v578 = vpop.f32.mrf.mxu0
    %v579 = vadd.f32 0.0, %v578
    %v580 = vpop.f32.mrf.mxu0
    %581 = vdwg.mxu0
    %v582 = vsel %vm121, %v579, -inf
    %583 = vmax.xlane.f32.xlu0 %v582
    %v584 = vpop.xlane.xlu0 %583
    %v585 = vsub.f32 %v579, %v584
    %v586 = vmul.f32 %v585, 1.442695
    %v587 = vpow.pop %v586
    %v588 = vsel %vm121, %v587, 0.0
    %589 = vadd.xlane.f32.xlu0 %v588
    %v590 = vpop.xlane.xlu0 %589
    %v591 = vpack.c.bf16 %v587, %v587
    %592 = vrot.lane.b32.xlu0 %v416, 48
    %v593 = vpop.permute.xlu0 %592
    %v595 = vsel %vm121, %v591, 0
    %v598 = vsel %vm156, %v593, 0
    %600 = vmatpush.bf16.msra.mxu0 0
    %601 = vmatpush.bf16.msra.mxu0 0
    %602 = vmatpush.bf16.msra.mxu0 0
    %603 = vmatpush.bf16.msra.mxu0 0
    %604 = vmatpush.bf16.msra.mxu0 0
    %605 = vmatpush.bf16.msra.mxu0 0
    %606 = vmatpush.bf16.msra.mxu0 0
    %607 = vmatpush.bf16.msra.mxu0 %v598
    %608 = vmatmul.bf16.gmra.mxu0 %v595
    %v609 = vpop.f32.mrf.mxu0
    %v610 = vadd.f32 0.0, %v609
    %v611 = vpop.f32.mrf.mxu0
    %612 = vdwg.mxu0
    %v613 = vrcp.pop %v590
    %v614 = vmul.f32 %v590, %v613
    %v615 = vsub.f32 1.0, %v614
    %v616 = vmul.f32 %v613, %v615
    %v617 = vadd.f32 %v613, %v616
    %vm618 = vweird.f32 %v590
    %vm619 = vweird.f32 %v613
    %vm620 = vmor %vm618, %vm619
    %v621 = vsel %vm620, %v613, %v617
    %v622 = vand.u32 2147483647, %v590
    %vm623 = vcmp.eq.f32.partialorder %v622, 8.507059e+37
    %v624 = vand.u32 %v590, 2147483648
    %v625 = vor.u32 1.1754944e-38, %v624
    %v626 = vsel %vm623, %v625, %v621
    %v627 = vmul.f32 %v610, %v626
    %629 = vrot.lane.b32.xlu0 %v627, 16
    %v630 = vpop.permute.xlu0 %629
    %632 = vst.msk [vmem:[#allocation2 + $0x8] sm:$0xff] %vm337, %v630
    %633 = vrot.lane.b32.xlu0 %v416, 104
    %v634 = vpop.permute.xlu0 %633
    %635 = vrot.lane.b32.xlu0 %v416, 72
    %v636 = vpop.permute.xlu0 %635
    %v638 = vsel %vm121, %v634, 0
    %v641 = vsel %vm121, %v636, 0
    %643 = vmatpush.bf16.xpose.msra.mxu0 0
    %644 = vmatpush.bf16.xpose.msra.mxu0 0
    %645 = vmatpush.bf16.xpose.msra.mxu0 0
    %646 = vmatpush.bf16.xpose.msra.mxu0 0
    %647 = vmatpush.bf16.xpose.msra.mxu0 0
    %648 = vmatpush.bf16.xpose.msra.mxu0 0
    %649 = vmatpush.bf16.xpose.msra.mxu0 0
    %650 = vmatpush.bf16.xpose.msra.mxu0 %v641
    %651 = vmatmul.bf16.gmra.mxu0 %v638
    %v652 = vpop.f32.mrf.mxu0
    %v653 = vadd.f32 0.0, %v652
    %v654 = vpop.f32.mrf.mxu0
    %655 = vdwg.mxu0
    %v656 = vsel %vm121, %v653, -inf
    %657 = vmax.xlane.f32.xlu0 %v656
    %v658 = vpop.xlane.xlu0 %657
    %v659 = vsub.f32 %v653, %v658
    %v660 = vmul.f32 %v659, 1.442695
    %v661 = vpow.pop %v660
    %v662 = vsel %vm121, %v661, 0.0
    %663 = vadd.xlane.f32.xlu0 %v662
    %v664 = vpop.xlane.xlu0 %663
    %v665 = vpack.c.bf16 %v661, %v661
    %666 = vrot.lane.b32.xlu0 %v416, 40
    %v667 = vpop.permute.xlu0 %666
    %v669 = vsel %vm121, %v665, 0
    %v672 = vsel %vm156, %v667, 0
    %674 = vmatpush.bf16.msra.mxu0 0
    %675 = vmatpush.bf16.msra.mxu0 0
    %676 = vmatpush.bf16.msra.mxu0 0
    %677 = vmatpush.bf16.msra.mxu0 0
    %678 = vmatpush.bf16.msra.mxu0 0
    %679 = vmatpush.bf16.msra.mxu0 0
    %680 = vmatpush.bf16.msra.mxu0 0
    %681 = vmatpush.bf16.msra.mxu0 %v672
    %682 = vmatmul.bf16.gmra.mxu0 %v669
    %v683 = vpop.f32.mrf.mxu0
    %v684 = vadd.f32 0.0, %v683
    %v685 = vpop.f32.mrf.mxu0
    %686 = vdwg.mxu0
    %v687 = vrcp.pop %v664
    %v688 = vmul.f32 %v664, %v687
    %v689 = vsub.f32 1.0, %v688
    %v690 = vmul.f32 %v687, %v689
    %v691 = vadd.f32 %v687, %v690
    %vm692 = vweird.f32 %v664
    %vm693 = vweird.f32 %v687
    %vm694 = vmor %vm692, %vm693
    %v695 = vsel %vm694, %v687, %v691
    %v696 = vand.u32 2147483647, %v664
    %vm697 = vcmp.eq.f32.partialorder %v696, 8.507059e+37
    %v698 = vand.u32 %v664, 2147483648
    %v699 = vor.u32 1.1754944e-38, %v698
    %v700 = vsel %vm697, %v699, %v695
    %v701 = vmul.f32 %v684, %v700
    %703 = vrot.lane.b32.xlu0 %v701, 24
    %v704 = vpop.permute.xlu0 %703
    %706 = vst.msk [vmem:[#allocation2 + $0x8] sm:$0xff] %vm412, %v704
    %v707 = vld [vmem:[#allocation2] sm:$0xff]
    %v708 = vld [vmem:[#allocation2 + $0x8] sm:$0xff]
    %v709 = vpack.c.bf16 %v708, %v707
    %v710 = vld [vmem:[#allocation8] sm:$0xf]
    %v711 = vld [vmem:[#allocation8 + $0x4] sm:$0xf]
    %v712 = vld [vmem:[#allocation8 + $0x8] sm:$0xf]
    %v713 = vld [vmem:[#allocation8 + $0xc] sm:$0xf]
    %v714 = vld [vmem:[%s4] sm:$0x1]
    %v716 = vperm.slane %v714, 0
    %v722 = vunpack.c.l.b16 %v710
    %v723 = vunpack.c.l.b16 %v711
    %v724 = vunpack.c.l.b16 %v712
    %v725 = vunpack.c.l.b16 %v713
    %v726 = vpack.c.b16 %v723, %v722
    %v727 = vpack.c.b16 %v725, %v724
    %v731 = vsel %vm96, %v709, 0
    %733 = vmatpush.bf16.msra.mxu0 0
    %734 = vmatpush.bf16.msra.mxu0 0
    %735 = vmatpush.bf16.msra.mxu0 0
    %736 = vmatpush.bf16.msra.mxu0 0
    %737 = vmatpush.bf16.msra.mxu0 0
    %738 = vmatpush.bf16.msra.mxu0 0
    %739 = vmatpush.bf16.msra.mxu0 %v727
    %740 = vmatpush.bf16.msra.mxu0 %v726
    %741 = vmatmul.bf16.gmra.mxu0 %v731
    %v742 = vpop.f32.mrf.mxu0
    %v743 = vadd.f32 %v716, %v742
    %v744 = vpop.f32.mrf.mxu0
    %v745 = vadd.f32 %v716, %v744
    %746 = vdwg.mxu0
    %747 = vst.msk [vmem:[#allocation9] sm:$0xff] %vm96, %v743
    %748 = vst.msk [vmem:[#allocation9 + $0x8] sm:$0xff] %vm96, %v745
    // Predicated region
    $region34: #{tpu_custom_call.1} parent=1 // pred_check
      _
    $region35: #{tpu_custom_call.1} parent=1 // pred_check_branch
      %750 = sbr.rel (0) target = $region37
    $region36: #{tpu_custom_call.1} parent=1 // pred_region
      %752 = vsyncadd [#allocation5], 0
      %s753 = sshll.u32 [#allocation9], 4
      %s754 = int_to_ptr.vmem [resolvable:$true] %s753
      %s755 = sshll.u32 %s5, 4
      %s756 = int_to_ptr.hbm [resolvable:$true] %s755
      %761 = dma.vmem_to_hbm [thread:$0]  %s754, 256, %s756, [#allocation5], 128, 128, 8
    $region37: #{tpu_custom_call.1} parent=1 // pred_fallthru
      _
    // Predicated region
    $region38: #{tpu_custom_call.1} parent=1 // pred_check
      _
    $region39: #{tpu_custom_call.1} parent=1 // pred_check_branch
      %763 = sbr.rel (0) target = $region41
    $region40: #{tpu_custom_call.1} parent=1 // pred_region
      %765 = dma.done [#allocation5], 256
    $region41: #{tpu_custom_call.1} parent=1 // pred_fallthru
      _
    %766 = vsyncpa [#allocation4], 1
    %767 = vsyncpa [#allocation7], 1
    %768 = vsyncpa [#allocation5], 1

</llo_original>
